<compile_context>
chip_gen: v7x
topology: tpu7x:2x2x1
jax: 0.10.0
libtpu: 0.0.40
codegen_flags: <defaults>
</compile_context>

<pallas_src>
import functools

import jax
import jax.numpy as jnp
from jax.experimental import pallas as pl
from jax.experimental.pallas import tpu as pltpu

NEG_SLOPE = 0.2     # PyG GATConv default leaky_relu negative_slope
MASK_VAL = -1e30    # additive mask value (logits path stays in f32)
LANES = 128         # slab width / lane-dense padded class dim


# ------------------------------ fused kernel ------------------------------- #
def _gat_fused_kernel(p_ref, out_ref, *, n, f, heads, hid, c2, off):
    f32 = jnp.float32
    hc1 = heads * hid
    v = off["vec"]

    # ---- unpack packed slab (static slices of a VMEM ref: no runtime cost) ----
    x     = p_ref[off["x"]:off["x"] + n, :f]               # (N, F)
    mask  = p_ref[off["mask"]:off["mask"] + n, :n]         # (N, N) additive: 0 edge / -1e30
    pool  = p_ref[off["pool"]:off["pool"] + n, :n]         # (S=N, N) mean-pool matrix
    w1    = p_ref[off["w1"]:off["w1"] + f, :hc1]           # (F, H*HID)
    a1d   = p_ref[off["a1d"]:off["a1d"] + hc1, :heads]     # (H*HID, H) block-diag att_dst
    a1s   = p_ref[off["a1s"]:off["a1s"] + heads, :hc1]     # (H, H*HID) block-diag att_src
    w2    = p_ref[off["w2"]:off["w2"] + hc1, :c2]          # (H*HID, C2)
    wfc   = p_ref[off["wfc"]:off["wfc"] + c2, :]           # (C2, 128) zero-padded classes
    b1    = p_ref[v + 0:v + 1, :hc1]                       # (1, H*HID)
    b2    = p_ref[v + 1:v + 2, :c2]                        # (1, C2)
    adst2 = p_ref[v + 2:v + 3, :c2]                        # (1, C2)
    asrc2 = p_ref[v + 3:v + 4, :c2]                        # (1, C2)
    bfc   = p_ref[v + 4:v + 5, :]                          # (1, 128) -1e30 in padded lanes

    # ------------------- conv1: GATConv(F -> HID, heads=H, concat) ------------
    h1 = jnp.dot(x, w1, preferred_element_type=f32)                        # (N, 32)
    # all-head attention scores, each already in its broadcast orientation
    dst = jnp.dot(h1, a1d, preferred_element_type=f32)                     # (N, H)
    src = jnp.einsum("hc,nc->hn", a1s, h1, preferred_element_type=f32)     # (H, N)

    blocks = []
    for h in range(heads):
        e = dst[:, h:h + 1] + src[h:h + 1, :]              # (N, N) broadcast add
        e = jnp.maximum(e, NEG_SLOPE * e)                  # leaky_relu
        blocks.append(e + mask)                            # additive adjacency mask
    logits = jnp.concatenate(blocks, axis=0)               # (H*N, N) heads on sublanes

    m = jnp.max(logits, axis=-1, keepdims=True)
    p = jnp.exp(logits - m)                                # masked entries underflow to 0
    alpha = p / jnp.sum(p, axis=-1, keepdims=True)         # (H*N, N) exact softmax

    # block-diagonal aggregation alpha_h @ h1_h, written straight into concat layout
    o1 = jnp.concatenate(
        [jnp.dot(alpha[h * n:(h + 1) * n, :], h1[:, h * hid:(h + 1) * hid],
                 preferred_element_type=f32) for h in range(heads)], axis=1)   # (N, 32)
    z1 = jnp.maximum(o1 + b1, 0.0)         # bias + relu (dropout = identity in eval)

    # --------------- conv2: GATConv(H*HID -> C2, heads=1, concat=False) -------
    h2 = jnp.dot(z1, w2, preferred_element_type=f32)                       # (N, C2)
    d2 = jnp.sum(h2 * adst2, axis=-1, keepdims=True)                       # (N, 1)
    s2 = jnp.einsum("xc,nc->xn", asrc2, h2, preferred_element_type=f32)    # (1, N)
    e2 = d2 + s2
    e2 = jnp.maximum(e2, NEG_SLOPE * e2)
    logits2 = e2 + mask
    m2 = jnp.max(logits2, axis=-1, keepdims=True)
    p2 = jnp.exp(logits2 - m2)
    alpha2 = p2 / jnp.sum(p2, axis=-1, keepdims=True)
    o2 = jnp.dot(alpha2, h2, preferred_element_type=f32)                   # (N, C2)
    z2 = jnp.maximum(o2 + b2, 0.0)         # bias + relu (dropout = identity in eval)

    # ----------- global_mean_pool + fc + log_softmax (lane-padded) ------------
    pooled = jnp.dot(pool, z2, preferred_element_type=f32)                 # (S, C2)
    lg = jnp.dot(pooled, wfc, preferred_element_type=f32) + bfc            # (S, 128)
    mm = jnp.max(lg, axis=-1, keepdims=True)
    sh = lg - mm
    lse = jnp.log(jnp.sum(jnp.exp(sh), axis=-1, keepdims=True))
    out_ref[...] = sh - lse                                                # lane-dense store


# ------------------------------ host wrapper -------------------------------- #
def _pack_slab(pieces):
    """Stack 2-D f32 arrays into one (rows, 128) slab: each piece starts at lane 0
    on an 8-aligned row.  Returns (slab, {name: row_offset})."""
    blocks, offs, r = [], {}, 0
    for name, a in pieces:
        a = jnp.asarray(a, jnp.float32)
        pad_r = (-a.shape[0]) % 8
        blocks.append(jnp.pad(a, ((0, pad_r), (0, LANES - a.shape[1]))))
        offs[name] = r
        r += a.shape[0] + pad_r
    return jnp.concatenate(blocks, axis=0), offs


def gat_forward(x, w1, att_src1, att_dst1, b1, w2, att_src2, att_dst2, b2,
                adj, pool, wfc, bfc, *, heads, hid, out_c, num_classes):
    """Full GAT forward (eval mode).  Returns (num_segments, num_classes) log-probs."""
    n, f = x.shape
    s = pool.shape[0]
    hc1 = heads * hid
    assert s == n  # global_mean_pool(size=data.num_nodes)

    # ---- one-time glue-side layout prep (tiny, outside the kernel) ----
    # block-structured per-head attention score matrices (zero off-head entries)
    a1d = jnp.zeros((hc1, heads), jnp.float32)   # column h = att_dst1[h] in head-h rows
    a1s = jnp.zeros((heads, hc1), jnp.float32)   # row h    = att_src1[h] in head-h cols
    for h in range(heads):
        a1d = a1d.at[h * hid:(h + 1) * hid, h].set(att_dst1[h])
        a1s = a1s.at[h, h * hid:(h + 1) * hid].set(att_src1[h])
    # additive adjacency mask: 0 where edge j->i (self loops included), -1e30 else.
    # Self loops guarantee >= 1 unmasked entry per row, so the softmax denom is > 0.
    mask_add = jnp.where(adj > 0, 0.0, MASK_VAL).astype(jnp.float32)       # (N, N)
    # lane-dense fc: classes padded to 128; padded lanes get -1e30 bias so they
    # contribute nothing to the log-softmax normalizer
    wfc_pad = jnp.zeros((out_c, LANES), jnp.float32).at[:, :num_classes].set(wfc)
    bfc_pad = jnp.full((LANES,), MASK_VAL, jnp.float32).at[:num_classes].set(bfc.reshape(-1))
    # small per-row vectors packed into a single 8-row block
    vec = jnp.zeros((8, LANES), jnp.float32)
    vec = vec.at[0, :hc1].set(b1.reshape(-1))
    vec = vec.at[1, :out_c].set(b2.reshape(-1))
    vec = vec.at[2, :out_c].set(att_dst2.reshape(-1))
    vec = vec.at[3, :out_c].set(att_src2.reshape(-1))
    vec = vec.at[4, :].set(bfc_pad)

    slab, off = _pack_slab([
        ("w1", w1), ("a1d", a1d), ("a1s", a1s), ("w2", w2), ("wfc", wfc_pad),
        ("vec", vec), ("pool", pool), ("mask", mask_add), ("x", x),
    ])

    kernel = functools.partial(_gat_fused_kernel, n=n, f=f, heads=heads,
                               hid=hid, c2=out_c, off=off)
    vmem = pl.BlockSpec(memory_space=pltpu.MemorySpace.VMEM)
    out_pad = pl.pallas_call(
        kernel,
        in_specs=[vmem],
        out_specs=vmem,
        out_shape=jax.ShapeDtypeStruct((s, LANES), jnp.float32),
    )(slab)
    return out_pad[:, :num_classes]


# ---------------------------------- main ------------------------------------ #
if __name__ == "__main__":
    N = 16            # data.num_nodes
    E = 32            # number of directed edges
    IN_C = 8          # in_channels
    HID = 8           # hidden_channels
    HEADS = 4
    OUT_C = 8         # out_channels
    NUM_CLASSES = 3   # dataset.num_classes

    key = jax.random.PRNGKey(0)
    ks = jax.random.split(key, 12)

    # ----- inputs -----
    x = jax.random.normal(ks[0], (N, IN_C), jnp.float32)          # tree_features
    src = jax.random.randint(ks[1], (E,), 0, N)
    dst = jax.random.randint(ks[2], (E,), 0, N)
    edge_index = jnp.stack([src, dst], axis=0)                    # (2, E)
    # graph assignment per node (dict_node)
    dict_node = jnp.concatenate([jnp.zeros(N // 2, jnp.int32),
                                 jnp.ones(N - N // 2, jnp.int32)])

    # dense adjacency: adj[i, j] = 1 iff edge j -> i, plus self loops
    adj = jnp.zeros((N, N), jnp.float32).at[edge_index[1], edge_index[0]].set(1.0)
    adj = jnp.maximum(adj, jnp.eye(N, dtype=jnp.float32))

    # ----- deterministic parameter init (glorot-uniform-style, zero biases) -----
    def glorot(k, shape):
        lim = (6.0 / (shape[0] + shape[-1])) ** 0.5
        return jax.random.uniform(k, shape, jnp.float32, -lim, lim)

    # conv1 = GATConv(IN_C, HID, heads=HEADS)  -> concat -> (N, HEADS*HID)
    w1 = glorot(ks[3], (IN_C, HEADS * HID))
    att_src1 = glorot(ks[4], (HEADS, HID))
    att_dst1 = glorot(ks[5], (HEADS, HID))
    b1 = jnp.zeros((1, HEADS * HID), jnp.float32)

    # conv2 = GATConv(HEADS*HID, OUT_C, heads=1, concat=False) -> (N, OUT_C)
    w2 = glorot(ks[6], (HEADS * HID, OUT_C))
    att_src2 = glorot(ks[7], (1, OUT_C))
    att_dst2 = glorot(ks[8], (1, OUT_C))
    b2 = jnp.zeros((1, OUT_C), jnp.float32)

    # fc = Linear(OUT_C, NUM_CLASSES)
    wfc = glorot(ks[9], (OUT_C, NUM_CLASSES))
    bfc = jnp.zeros((1, NUM_CLASSES), jnp.float32)

    # global_mean_pool(x, dict_node, size=N): mean-pool matrix (N segments, N nodes)
    one_hot = (dict_node[None, :] == jnp.arange(N)[:, None]).astype(jnp.float32)
    counts = jnp.maximum(one_hot.sum(axis=1, keepdims=True), 1.0)
    pool = one_hot / counts                                        # (N, N)

    # ----- fused forward pass (eval mode: dropout is identity) -----
    out = gat_forward(x, w1, att_src1, att_dst1, b1,
                      w2, att_src2, att_dst2, b2,
                      adj, pool, wfc, bfc,
                      heads=HEADS, hid=HID, out_c=OUT_C, num_classes=NUM_CLASSES)

    out = jax.block_until_ready(out)
    assert out.shape == (N, NUM_CLASSES)
    assert bool(jnp.all(jnp.isfinite(out)))
    print("KERNEL_OK")
</pallas_src>

<mosaic_0001>
module attributes {stable_mosaic.version = 11 : i64} {
  func.func @_gat_fused_kernel(%arg0: memref<144x128xf32, #tpu.memory_space<vmem>>, %arg1: memref<16x128xf32, #tpu.memory_space<vmem>>) attributes {dimension_semantics = [], scalar_prefetch = 0 : i64, scratch_operands = 0 : i64, tpu.core_type = #tpu.core_type<tc>} {
    %c128 = arith.constant 128 : index
    %c0 = arith.constant 0 : index
    %0 = vector.load %arg0[%c128, %c0] : memref<144x128xf32, #tpu.memory_space<vmem>>, vector<16x8xf32>
    %c112 = arith.constant 112 : index
    %c0_0 = arith.constant 0 : index
    %1 = vector.load %arg0[%c112, %c0_0] : memref<144x128xf32, #tpu.memory_space<vmem>>, vector<16x16xf32>
    %c96 = arith.constant 96 : index
    %c0_1 = arith.constant 0 : index
    %2 = vector.load %arg0[%c96, %c0_1] : memref<144x128xf32, #tpu.memory_space<vmem>>, vector<16x16xf32>
    %c0_2 = arith.constant 0 : index
    %c0_3 = arith.constant 0 : index
    %3 = vector.load %arg0[%c0_2, %c0_3] : memref<144x128xf32, #tpu.memory_space<vmem>>, vector<8x32xf32>
    %c8 = arith.constant 8 : index
    %c0_4 = arith.constant 0 : index
    %4 = vector.load %arg0[%c8, %c0_4] : memref<144x128xf32, #tpu.memory_space<vmem>>, vector<32x4xf32>
    %c40 = arith.constant 40 : index
    %c0_5 = arith.constant 0 : index
    %5 = vector.load %arg0[%c40, %c0_5] : memref<144x128xf32, #tpu.memory_space<vmem>>, vector<4x32xf32>
    %c48 = arith.constant 48 : index
    %c0_6 = arith.constant 0 : index
    %6 = vector.load %arg0[%c48, %c0_6] : memref<144x128xf32, #tpu.memory_space<vmem>>, vector<32x8xf32>
    %c80 = arith.constant 80 : index
    %c0_7 = arith.constant 0 : index
    %7 = vector.load %arg0[%c80, %c0_7] : memref<144x128xf32, #tpu.memory_space<vmem>>, vector<8x128xf32>
    %c88 = arith.constant 88 : index
    %c0_8 = arith.constant 0 : index
    %8 = vector.load %arg0[%c88, %c0_8] : memref<144x128xf32, #tpu.memory_space<vmem>>, vector<1x32xf32>
    %c89 = arith.constant 89 : index
    %c0_9 = arith.constant 0 : index
    %9 = vector.load %arg0[%c89, %c0_9] : memref<144x128xf32, #tpu.memory_space<vmem>>, vector<1x8xf32>
    %c90 = arith.constant 90 : index
    %c0_10 = arith.constant 0 : index
    %10 = vector.load %arg0[%c90, %c0_10] : memref<144x128xf32, #tpu.memory_space<vmem>>, vector<1x8xf32>
    %c91 = arith.constant 91 : index
    %c0_11 = arith.constant 0 : index
    %11 = vector.load %arg0[%c91, %c0_11] : memref<144x128xf32, #tpu.memory_space<vmem>>, vector<1x8xf32>
    %c92 = arith.constant 92 : index
    %c0_12 = arith.constant 0 : index
    %12 = vector.load %arg0[%c92, %c0_12] : memref<144x128xf32, #tpu.memory_space<vmem>>, vector<1x128xf32>
    %cst = arith.constant dense<0.000000e+00> : vector<16x32xf32>
    %13 = tpu.matmul %0, %3, %cst {dimension_numbers = #tpu.dot_dimension_numbers<[1], [0], [0], [1], [0, 0, 1, 1], [], []>} : vector<16x8xf32>, vector<8x32xf32>, vector<16x32xf32> -> vector<16x32xf32>
    %cst_13 = arith.constant dense<0.000000e+00> : vector<16x4xf32>
    %14 = tpu.matmul %13, %4, %cst_13 {dimension_numbers = #tpu.dot_dimension_numbers<[1], [0], [0], [1], [0, 0, 1, 1], [], []>} : vector<16x32xf32>, vector<32x4xf32>, vector<16x4xf32> -> vector<16x4xf32>
    "tpu.trace_start"() <{level = 10 : i32, message = "hc,nc->hn"}> : () -> ()
    %cst_14 = arith.constant dense<0.000000e+00> : vector<4x16xf32>
    %15 = tpu.matmul %5, %13, %cst_14 {dimension_numbers = #tpu.dot_dimension_numbers<[1], [1], [0], [0], [0, 0, 1, 0], [], []>} : vector<4x32xf32>, vector<16x32xf32>, vector<4x16xf32> -> vector<4x16xf32>
    "tpu.trace_stop"() : () -> ()
    %16 = vector.extract_strided_slice %14 {offsets = [0, 0], sizes = [16, 1], strides = [1, 1]} : vector<16x4xf32> to vector<16x1xf32>
    %17 = vector.extract_strided_slice %15 {offsets = [0, 0], sizes = [1, 16], strides = [1, 1]} : vector<4x16xf32> to vector<1x16xf32>
    %18 = vector.broadcast %16 : vector<16x1xf32> to vector<16x16xf32>
    %19 = vector.broadcast %17 : vector<1x16xf32> to vector<16x16xf32>
    %20 = arith.addf %18, %19 : vector<16x16xf32>
    %cst_15 = arith.constant 2.000000e-01 : f32
    %21 = vector.broadcast %cst_15 : f32 to vector<16x16xf32>
    %22 = arith.mulf %21, %20 : vector<16x16xf32>
    %23 = arith.maximumf %20, %22 : vector<16x16xf32>
    %24 = arith.addf %23, %1 : vector<16x16xf32>
    %25 = vector.extract_strided_slice %14 {offsets = [0, 1], sizes = [16, 1], strides = [1, 1]} : vector<16x4xf32> to vector<16x1xf32>
    %26 = vector.extract_strided_slice %15 {offsets = [1, 0], sizes = [1, 16], strides = [1, 1]} : vector<4x16xf32> to vector<1x16xf32>
    %27 = vector.broadcast %25 : vector<16x1xf32> to vector<16x16xf32>
    %28 = vector.broadcast %26 : vector<1x16xf32> to vector<16x16xf32>
    %29 = arith.addf %27, %28 : vector<16x16xf32>
    %cst_16 = arith.constant 2.000000e-01 : f32
    %30 = vector.broadcast %cst_16 : f32 to vector<16x16xf32>
    %31 = arith.mulf %30, %29 : vector<16x16xf32>
    %32 = arith.maximumf %29, %31 : vector<16x16xf32>
    %33 = arith.addf %32, %1 : vector<16x16xf32>
    %34 = vector.extract_strided_slice %14 {offsets = [0, 2], sizes = [16, 1], strides = [1, 1]} : vector<16x4xf32> to vector<16x1xf32>
    %35 = vector.extract_strided_slice %15 {offsets = [2, 0], sizes = [1, 16], strides = [1, 1]} : vector<4x16xf32> to vector<1x16xf32>
    %36 = vector.broadcast %34 : vector<16x1xf32> to vector<16x16xf32>
    %37 = vector.broadcast %35 : vector<1x16xf32> to vector<16x16xf32>
    %38 = arith.addf %36, %37 : vector<16x16xf32>
    %cst_17 = arith.constant 2.000000e-01 : f32
    %39 = vector.broadcast %cst_17 : f32 to vector<16x16xf32>
    %40 = arith.mulf %39, %38 : vector<16x16xf32>
    %41 = arith.maximumf %38, %40 : vector<16x16xf32>
    %42 = arith.addf %41, %1 : vector<16x16xf32>
    %43 = vector.extract_strided_slice %14 {offsets = [0, 3], sizes = [16, 1], strides = [1, 1]} : vector<16x4xf32> to vector<16x1xf32>
    %44 = vector.extract_strided_slice %15 {offsets = [3, 0], sizes = [1, 16], strides = [1, 1]} : vector<4x16xf32> to vector<1x16xf32>
    %45 = vector.broadcast %43 : vector<16x1xf32> to vector<16x16xf32>
    %46 = vector.broadcast %44 : vector<1x16xf32> to vector<16x16xf32>
    %47 = arith.addf %45, %46 : vector<16x16xf32>
    %cst_18 = arith.constant 2.000000e-01 : f32
    %48 = vector.broadcast %cst_18 : f32 to vector<16x16xf32>
    %49 = arith.mulf %48, %47 : vector<16x16xf32>
    %50 = arith.maximumf %47, %49 : vector<16x16xf32>
    %51 = arith.addf %50, %1 : vector<16x16xf32>
    %52 = tpu.concatenate %24, %33, %42, %51 in 0 : vector<16x16xf32>, vector<16x16xf32>, vector<16x16xf32>, vector<16x16xf32> -> vector<64x16xf32>
    %cst_19 = arith.constant dense<0xFF800000> : vector<64xf32>
    %53 = vector.multi_reduction <maximumf>, %52, %cst_19 [1] : vector<64x16xf32> to vector<64xf32>
    %54 = vector.shape_cast %53 : vector<64xf32> to vector<64x1xf32>
    %55 = vector.broadcast %54 : vector<64x1xf32> to vector<64x16xf32>
    %56 = arith.subf %52, %55 : vector<64x16xf32>
    %57 = math.exp %56 : vector<64x16xf32>
    %cst_20 = arith.constant dense<0.000000e+00> : vector<64xf32>
    %58 = vector.multi_reduction <add>, %57, %cst_20 [1] : vector<64x16xf32> to vector<64xf32>
    %59 = vector.shape_cast %58 : vector<64xf32> to vector<64x1xf32>
    %60 = vector.broadcast %59 : vector<64x1xf32> to vector<64x16xf32>
    %61 = arith.divf %57, %60 : vector<64x16xf32>
    %62 = vector.extract_strided_slice %61 {offsets = [0, 0], sizes = [16, 16], strides = [1, 1]} : vector<64x16xf32> to vector<16x16xf32>
    %63 = vector.extract_strided_slice %13 {offsets = [0, 0], sizes = [16, 8], strides = [1, 1]} : vector<16x32xf32> to vector<16x8xf32>
    %cst_21 = arith.constant dense<0.000000e+00> : vector<16x8xf32>
    %64 = tpu.matmul %62, %63, %cst_21 {dimension_numbers = #tpu.dot_dimension_numbers<[1], [0], [0], [1], [0, 0, 1, 1], [], []>} : vector<16x16xf32>, vector<16x8xf32>, vector<16x8xf32> -> vector<16x8xf32>
    %65 = vector.extract_strided_slice %61 {offsets = [16, 0], sizes = [16, 16], strides = [1, 1]} : vector<64x16xf32> to vector<16x16xf32>
    %66 = vector.extract_strided_slice %13 {offsets = [0, 8], sizes = [16, 8], strides = [1, 1]} : vector<16x32xf32> to vector<16x8xf32>
    %cst_22 = arith.constant dense<0.000000e+00> : vector<16x8xf32>
    %67 = tpu.matmul %65, %66, %cst_22 {dimension_numbers = #tpu.dot_dimension_numbers<[1], [0], [0], [1], [0, 0, 1, 1], [], []>} : vector<16x16xf32>, vector<16x8xf32>, vector<16x8xf32> -> vector<16x8xf32>
    %68 = vector.extract_strided_slice %61 {offsets = [32, 0], sizes = [16, 16], strides = [1, 1]} : vector<64x16xf32> to vector<16x16xf32>
    %69 = vector.extract_strided_slice %13 {offsets = [0, 16], sizes = [16, 8], strides = [1, 1]} : vector<16x32xf32> to vector<16x8xf32>
    %cst_23 = arith.constant dense<0.000000e+00> : vector<16x8xf32>
    %70 = tpu.matmul %68, %69, %cst_23 {dimension_numbers = #tpu.dot_dimension_numbers<[1], [0], [0], [1], [0, 0, 1, 1], [], []>} : vector<16x16xf32>, vector<16x8xf32>, vector<16x8xf32> -> vector<16x8xf32>
    %71 = vector.extract_strided_slice %61 {offsets = [48, 0], sizes = [16, 16], strides = [1, 1]} : vector<64x16xf32> to vector<16x16xf32>
    %72 = vector.extract_strided_slice %13 {offsets = [0, 24], sizes = [16, 8], strides = [1, 1]} : vector<16x32xf32> to vector<16x8xf32>
    %cst_24 = arith.constant dense<0.000000e+00> : vector<16x8xf32>
    %73 = tpu.matmul %71, %72, %cst_24 {dimension_numbers = #tpu.dot_dimension_numbers<[1], [0], [0], [1], [0, 0, 1, 1], [], []>} : vector<16x16xf32>, vector<16x8xf32>, vector<16x8xf32> -> vector<16x8xf32>
    %74 = tpu.concatenate %64, %67, %70, %73 in 1 : vector<16x8xf32>, vector<16x8xf32>, vector<16x8xf32>, vector<16x8xf32> -> vector<16x32xf32>
    %75 = vector.broadcast %8 : vector<1x32xf32> to vector<16x32xf32>
    %76 = arith.addf %74, %75 : vector<16x32xf32>
    %cst_25 = arith.constant 0.000000e+00 : f32
    %77 = vector.broadcast %cst_25 : f32 to vector<16x32xf32>
    %78 = arith.maximumf %76, %77 : vector<16x32xf32>
    %cst_26 = arith.constant dense<0.000000e+00> : vector<16x8xf32>
    %79 = tpu.matmul %78, %6, %cst_26 {dimension_numbers = #tpu.dot_dimension_numbers<[1], [0], [0], [1], [0, 0, 1, 1], [], []>} : vector<16x32xf32>, vector<32x8xf32>, vector<16x8xf32> -> vector<16x8xf32>
    %80 = vector.broadcast %10 : vector<1x8xf32> to vector<16x8xf32>
    %81 = arith.mulf %79, %80 : vector<16x8xf32>
    %cst_27 = arith.constant dense<0.000000e+00> : vector<16xf32>
    %82 = vector.multi_reduction <add>, %81, %cst_27 [1] : vector<16x8xf32> to vector<16xf32>
    %83 = vector.shape_cast %82 : vector<16xf32> to vector<16x1xf32>
    "tpu.trace_start"() <{level = 10 : i32, message = "xc,nc->xn"}> : () -> ()
    %cst_28 = arith.constant dense<0.000000e+00> : vector<1x16xf32>
    %84 = tpu.matmul %11, %79, %cst_28 {dimension_numbers = #tpu.dot_dimension_numbers<[1], [1], [0], [0], [0, 0, 1, 0], [], []>} : vector<1x8xf32>, vector<16x8xf32>, vector<1x16xf32> -> vector<1x16xf32>
    "tpu.trace_stop"() : () -> ()
    %85 = vector.broadcast %83 : vector<16x1xf32> to vector<16x16xf32>
    %86 = vector.broadcast %84 : vector<1x16xf32> to vector<16x16xf32>
    %87 = arith.addf %85, %86 : vector<16x16xf32>
    %cst_29 = arith.constant 2.000000e-01 : f32
    %88 = vector.broadcast %cst_29 : f32 to vector<16x16xf32>
    %89 = arith.mulf %88, %87 : vector<16x16xf32>
    %90 = arith.maximumf %87, %89 : vector<16x16xf32>
    %91 = arith.addf %90, %1 : vector<16x16xf32>
    %cst_30 = arith.constant dense<0xFF800000> : vector<16xf32>
    %92 = vector.multi_reduction <maximumf>, %91, %cst_30 [1] : vector<16x16xf32> to vector<16xf32>
    %93 = vector.shape_cast %92 : vector<16xf32> to vector<16x1xf32>
    %94 = vector.broadcast %93 : vector<16x1xf32> to vector<16x16xf32>
    %95 = arith.subf %91, %94 : vector<16x16xf32>
    %96 = math.exp %95 : vector<16x16xf32>
    %cst_31 = arith.constant dense<0.000000e+00> : vector<16xf32>
    %97 = vector.multi_reduction <add>, %96, %cst_31 [1] : vector<16x16xf32> to vector<16xf32>
    %98 = vector.shape_cast %97 : vector<16xf32> to vector<16x1xf32>
    %99 = vector.broadcast %98 : vector<16x1xf32> to vector<16x16xf32>
    %100 = arith.divf %96, %99 : vector<16x16xf32>
    %cst_32 = arith.constant dense<0.000000e+00> : vector<16x8xf32>
    %101 = tpu.matmul %100, %79, %cst_32 {dimension_numbers = #tpu.dot_dimension_numbers<[1], [0], [0], [1], [0, 0, 1, 1], [], []>} : vector<16x16xf32>, vector<16x8xf32>, vector<16x8xf32> -> vector<16x8xf32>
    %102 = vector.broadcast %9 : vector<1x8xf32> to vector<16x8xf32>
    %103 = arith.addf %101, %102 : vector<16x8xf32>
    %cst_33 = arith.constant 0.000000e+00 : f32
    %104 = vector.broadcast %cst_33 : f32 to vector<16x8xf32>
    %105 = arith.maximumf %103, %104 : vector<16x8xf32>
    %cst_34 = arith.constant dense<0.000000e+00> : vector<16x8xf32>
    %106 = tpu.matmul %2, %105, %cst_34 {dimension_numbers = #tpu.dot_dimension_numbers<[1], [0], [0], [1], [0, 0, 1, 1], [], []>} : vector<16x16xf32>, vector<16x8xf32>, vector<16x8xf32> -> vector<16x8xf32>
    %cst_35 = arith.constant dense<0.000000e+00> : vector<16x128xf32>
    %107 = tpu.matmul %106, %7, %cst_35 {dimension_numbers = #tpu.dot_dimension_numbers<[1], [0], [0], [1], [0, 0, 1, 1], [], []>} : vector<16x8xf32>, vector<8x128xf32>, vector<16x128xf32> -> vector<16x128xf32>
    %108 = vector.broadcast %12 : vector<1x128xf32> to vector<16x128xf32>
    %109 = arith.addf %107, %108 : vector<16x128xf32>
    %cst_36 = arith.constant dense<0xFF800000> : vector<16xf32>
    %110 = vector.multi_reduction <maximumf>, %109, %cst_36 [1] : vector<16x128xf32> to vector<16xf32>
    %111 = vector.shape_cast %110 : vector<16xf32> to vector<16x1xf32>
    %112 = vector.broadcast %111 : vector<16x1xf32> to vector<16x128xf32>
    %113 = arith.subf %109, %112 : vector<16x128xf32>
    %114 = math.exp %113 : vector<16x128xf32>
    %cst_37 = arith.constant dense<0.000000e+00> : vector<16xf32>
    %115 = vector.multi_reduction <add>, %114, %cst_37 [1] : vector<16x128xf32> to vector<16xf32>
    %116 = vector.shape_cast %115 : vector<16xf32> to vector<16x1xf32>
    %117 = math.log %116 : vector<16x1xf32>
    %118 = vector.broadcast %117 : vector<16x1xf32> to vector<16x128xf32>
    %119 = arith.subf %113, %118 : vector<16x128xf32>
    %c0_38 = arith.constant 0 : index
    %c0_39 = arith.constant 0 : index
    %120 = vector.load %arg1[%c0_38, %c0_39] : memref<16x128xf32, #tpu.memory_space<vmem>>, vector<16x128xf32>
    tpu.vector_store %arg1[%c0_38, %c0_39], %119 {strides = array<i32>} : memref<16x128xf32, #tpu.memory_space<vmem>>, vector<16x128xf32>,
    return
  }
}

</mosaic_0001>

<llo_original>
// kernel: tpu_custom_call.1
$region0: #{tpu_custom_call.1}
  #allocation0 [shape = 'u32[]', space=smem, size = 0x4, offset = 0x4, fixed_abs, tag = 'smem constant byte address 0x4 - core index']
  #allocation1 [shape = 'u32[144,128]{1,0:T(1,128)}', space=vmem, size = 0x12000, scoped, tag = 'internal scratch']
  %s0 = inlined_call_operand.hbm [shape: f32[144,128], index: 0, kind: input, shape index: {}]
  %s1 = inlined_call_operand.hbm [shape: f32[16,128], index: 1, kind: output, shape index: {}]
  %s2 = sld [smem:[#allocation0]]
  $region18: #{tpu_custom_call.1} parent=0
    _
  %s4 = ssub.s32 1, %s2
  %s5 = scalar_select 0, %s4, %s2
  $region1: #{tpu_custom_call.1} parent=0
    #allocation2 [shape = 'u8[73728]{0}', space=vmem, size = 0x12000, scoped, tag = 'input window, operand 0, single buffered']
    #allocation3 [shape = 's32[1]{0}', space=sflag, size = 0x4, scoped, tag = 'scoped memory for tpu_custom_call.1']
    #allocation4 [shape = 's32[1]{0}', space=sflag, size = 0x4, scoped, tag = 'scoped memory for tpu_custom_call.1']
    #allocation5 [shape = 'u8[8192]{0}', space=vmem, size = 0x2000, scoped, tag = 'output window, operand 0, single buffered']
    %6 = vsyncpa [#allocation3], 0
    %7 = vsyncpa [#allocation4], 0
    // Predicated region
    $region2: #{tpu_custom_call.1} parent=1 // pred_check
      _
    $region3: #{tpu_custom_call.1} parent=1 // pred_check_branch
      %9 = sbr.rel (0) target = $region5
    $region4: #{tpu_custom_call.1} parent=1 // pred_region
      %s11 = ssub.s32 2304, 2304
      %12 = vsyncadd [#allocation3], %s11
      %s13 = sshll.u32 [#allocation2], 4
      %s14 = int_to_ptr.vmem [resolvable:$true] %s13
      %19 = dma.hbm_to_vmem [thread:$0]  %s0, 2304, %s14, [#allocation3], 128, 128, 8
    $region5: #{tpu_custom_call.1} parent=1 // pred_fallthru
      _
    // Predicated region
    $region6: #{tpu_custom_call.1} parent=1 // pred_check
      _
    $region7: #{tpu_custom_call.1} parent=1 // pred_check_branch
      %21 = sbr.rel (0) target = $region9
    $region8: #{tpu_custom_call.1} parent=1 // pred_region
      %22 = dma.done [#allocation3], 2304
    $region9: #{tpu_custom_call.1} parent=1 // pred_fallthru
      _
    %v23 = vld [vmem:[#allocation2 + $0x80] sm:$0xff]
    %v24 = vld [vmem:[#allocation2 + $0x88] sm:$0xff]
    %v25 = vld [vmem:[#allocation2 + $0x70] sm:$0xff]
    %v26 = vld [vmem:[#allocation2 + $0x78] sm:$0xff]
    %v27 = vld [vmem:[#allocation2 + $0x60] sm:$0xff]
    %v28 = vld [vmem:[#allocation2 + $0x68] sm:$0xff]
    %v29 = vld [vmem:[#allocation2] sm:$0xff]
    %v30 = vld [vmem:[#allocation2 + $0x8] sm:$0xff]
    %v31 = vld [vmem:[#allocation2 + $0x10] sm:$0xff]
    %v32 = vld [vmem:[#allocation2 + $0x18] sm:$0xff]
    %v33 = vld [vmem:[#allocation2 + $0x20] sm:$0xff]
    %v34 = vld [vmem:[#allocation2 + $0x28] sm:$0xf]
    %v35 = vld [vmem:[#allocation2 + $0x30] sm:$0xff]
    %v36 = vld [vmem:[#allocation2 + $0x38] sm:$0xff]
    %v37 = vld [vmem:[#allocation2 + $0x40] sm:$0xff]
    %v38 = vld [vmem:[#allocation2 + $0x48] sm:$0xff]
    %v39 = vld [vmem:[#allocation2 + $0x50] sm:$0xff]
    %v40 = vld [vmem:[#allocation2 + $0x58] sm:$0x1]
    %v41 = vld [vmem:[#allocation2 + $0x59] sm:$0x1]
    %v42 = vld [vmem:[#allocation2 + $0x5a] sm:$0x1]
    %v43 = vld [vmem:[#allocation2 + $0x5b] sm:$0x1]
    %v44 = vld [vmem:[#allocation2 + $0x5c] sm:$0x1]
    %vm45 = vcmask 64512
    %v47 = vsel %vm45, %v23, 0
    %v50 = vsel %vm45, %v24, 0
    %52 = vmatprep.subr.mxu0 0.0
    %53 = vmatpush1.msra.mxu0 %v29
    %54 = vmatprep.subr.mxu0 0.0
    %55 = vmatpush1.msra.mxu0 0.0
    %56 = vmatprep.subr.mxu0 0.0
    %57 = vmatpush1.msra.mxu0 0.0
    %58 = vmatprep.subr.mxu0 0.0
    %59 = vmatpush1.msra.mxu0 0.0
    %60 = vmatprep.subr.mxu0 0.0
    %61 = vmatpush1.msra.mxu0 0.0
    %62 = vmatprep.subr.mxu0 0.0
    %63 = vmatpush1.msra.mxu0 0.0
    %64 = vmatprep.subr.mxu0 0.0
    %65 = vmatpush1.msra.mxu0 0.0
    %66 = vmatprep.subr.mxu0 0.0
    %67 = vmatpush1.msra.mxu0 0.0
    %68 = vmatprep.subr.mxu0 0.0
    %69 = vmatpush1.msra.mxu0 0.0
    %70 = vmatprep.subr.mxu0 0.0
    %71 = vmatpush1.msra.mxu0 0.0
    %72 = vmatprep.subr.mxu0 0.0
    %73 = vmatpush1.msra.mxu0 0.0
    %74 = vmatprep.subr.mxu0 0.0
    %75 = vmatpush1.msra.mxu0 0.0
    %76 = vmatprep.subr.mxu0 0.0
    %77 = vmatpush1.msra.mxu0 0.0
    %78 = vmatprep.subr.mxu0 0.0
    %79 = vmatpush1.msra.mxu0 0.0
    %80 = vmatprep.subr.mxu0 0.0
    %81 = vmatpush1.msra.mxu0 0.0
    %82 = vmatprep.subr.mxu0 0.0
    %83 = vmatpush1.msra.mxu0 0.0
    %84 = vmatprep.subr.mxu0 0.0
    %85 = vmatpush1.msra.mxu0 0.0
    %86 = vmatprep.subr.mxu0 0.0
    %87 = vmatpush1.msra.mxu0 0.0
    %88 = vmatprep.subr.mxu0 0.0
    %89 = vmatpush1.msra.mxu0 0.0
    %90 = vmatprep.subr.mxu0 0.0
    %91 = vmatpush1.msra.mxu0 0.0
    %92 = vmatprep.subr.mxu0 0.0
    %93 = vmatpush1.msra.mxu0 0.0
    %94 = vmatprep.subr.mxu0 0.0
    %95 = vmatpush1.msra.mxu0 0.0
    %96 = vmatprep.subr.mxu0 0.0
    %97 = vmatpush1.msra.mxu0 0.0
    %98 = vmatprep.subr.mxu0 0.0
    %99 = vmatpush1.msra.mxu0 0.0
    %100 = vmatprep.subr.mxu0 0.0
    %101 = vmatpush1.msra.mxu0 0.0
    %102 = vmatprep.subr.mxu0 0.0
    %103 = vmatpush1.msra.mxu0 0.0
    %104 = vmatprep.subr.mxu0 0.0
    %105 = vmatpush1.msra.mxu0 0.0
    %106 = vmatprep.subr.mxu0 0.0
    %107 = vmatpush1.msra.mxu0 0.0
    %108 = vmatprep.subr.mxu0 0.0
    %109 = vmatpush1.msra.mxu0 0.0
    %110 = vmatprep.subr.mxu0 0.0
    %111 = vmatpush1.msra.mxu0 0.0
    %112 = vmatprep.subr.mxu0 0.0
    %113 = vmatpush1.msra.mxu0 0.0
    %114 = vmatprep.subr.mxu0 0.0
    %115 = vmatpush1.msra.mxu0 0.0
    %116 = vmatprep.mubr.f32.mxu0 0.0
    %117 = vmatmul.mubr.f32.gmra.mrb[0].mxu0 %v47
    %v118 = vpop.f32.mrb[0].mxu0
    %v119 = vadd.f32 0.0, %v118
    %v120 = vpop.f32.mrb[0].mxu0
    %121 = vmatprep.mubr.f32.mxu0 0.0
    %122 = vmatmul.mubr.f32.gmra.mrb[0].mxu0 %v50
    %v123 = vpop.f32.mrb[0].mxu0
    %v124 = vadd.f32 0.0, %v123
    %v125 = vpop.f32.mrb[0].mxu0
    %126 = vdwg.mxu0
    %vm127 = vcmask 261120
    %v129 = vsel %vm127, %v119, 0
    %v132 = vsel %vm127, %v124, 0
    %134 = vmatprep.subr.mxu0 0.0
    %135 = vmatpush1.msra.mxu0 %v30
    %136 = vmatprep.subr.mxu0 0.0
    %137 = vmatpush1.msra.mxu0 %v31
    %138 = vmatprep.subr.mxu0 0.0
    %139 = vmatpush1.msra.mxu0 %v32
    %140 = vmatprep.subr.mxu0 0.0
    %141 = vmatpush1.msra.mxu0 %v33
    %142 = vmatprep.subr.mxu0 0.0
    %143 = vmatpush1.msra.mxu0 0.0
    %144 = vmatprep.subr.mxu0 0.0
    %145 = vmatpush1.msra.mxu0 0.0
    %146 = vmatprep.subr.mxu0 0.0
    %147 = vmatpush1.msra.mxu0 0.0
    %148 = vmatprep.subr.mxu0 0.0
    %149 = vmatpush1.msra.mxu0 0.0
    %150 = vmatprep.subr.mxu0 0.0
    %151 = vmatpush1.msra.mxu0 0.0
    %152 = vmatprep.subr.mxu0 0.0
    %153 = vmatpush1.msra.mxu0 0.0
    %154 = vmatprep.subr.mxu0 0.0
    %155 = vmatpush1.msra.mxu0 0.0
    %156 = vmatprep.subr.mxu0 0.0
    %157 = vmatpush1.msra.mxu0 0.0
    %158 = vmatprep.subr.mxu0 0.0
    %159 = vmatpush1.msra.mxu0 0.0
    %160 = vmatprep.subr.mxu0 0.0
    %161 = vmatpush1.msra.mxu0 0.0
    %162 = vmatprep.subr.mxu0 0.0
    %163 = vmatpush1.msra.mxu0 0.0
    %164 = vmatprep.subr.mxu0 0.0
    %165 = vmatpush1.msra.mxu0 0.0
    %166 = vmatprep.subr.mxu0 0.0
    %167 = vmatpush1.msra.mxu0 0.0
    %168 = vmatprep.subr.mxu0 0.0
    %169 = vmatpush1.msra.mxu0 0.0
    %170 = vmatprep.subr.mxu0 0.0
    %171 = vmatpush1.msra.mxu0 0.0
    %172 = vmatprep.subr.mxu0 0.0
    %173 = vmatpush1.msra.mxu0 0.0
    %174 = vmatprep.subr.mxu0 0.0
    %175 = vmatpush1.msra.mxu0 0.0
    %176 = vmatprep.subr.mxu0 0.0
    %177 = vmatpush1.msra.mxu0 0.0
    %178 = vmatprep.subr.mxu0 0.0
    %179 = vmatpush1.msra.mxu0 0.0
    %180 = vmatprep.subr.mxu0 0.0
    %181 = vmatpush1.msra.mxu0 0.0
    %182 = vmatprep.subr.mxu0 0.0
    %183 = vmatpush1.msra.mxu0 0.0
    %184 = vmatprep.subr.mxu0 0.0
    %185 = vmatpush1.msra.mxu0 0.0
    %186 = vmatprep.subr.mxu0 0.0
    %187 = vmatpush1.msra.mxu0 0.0
    %188 = vmatprep.subr.mxu0 0.0
    %189 = vmatpush1.msra.mxu0 0.0
    %190 = vmatprep.subr.mxu0 0.0
    %191 = vmatpush1.msra.mxu0 0.0
    %192 = vmatprep.subr.mxu0 0.0
    %193 = vmatpush1.msra.mxu0 0.0
    %194 = vmatprep.subr.mxu0 0.0
    %195 = vmatpush1.msra.mxu0 0.0
    %196 = vmatprep.subr.mxu0 0.0
    %197 = vmatpush1.msra.mxu0 0.0
    %198 = vmatprep.mubr.f32.mxu0 0.0
    %199 = vmatmul.mubr.f32.gmra.mrb[0].mxu0 %v129
    %v200 = vpop.f32.mrb[0].mxu0
    %v201 = vadd.f32 0.0, %v200
    %v202 = vpop.f32.mrb[0].mxu0
    %203 = vmatprep.mubr.f32.mxu0 0.0
    %204 = vmatmul.mubr.f32.gmra.mrb[0].mxu0 %v132
    %v205 = vpop.f32.mrb[0].mxu0
    %v206 = vadd.f32 0.0, %v205
    %v207 = vpop.f32.mrb[0].mxu0
    %208 = vdwg.mxu0
    %v210 = vsel %vm127, %v34, 0
    %212 = vmatprep.subr.mxu0 0.0
    %213 = vmatpush1.xpose.msra.mxu0 %v129
    %214 = vmatprep.subr.mxu0 0.0
    %215 = vmatpush1.xpose.msra.mxu0 %v132
    %216 = vmatprep.subr.mxu0 0.0
    %217 = vmatpush1.xpose.msra.mxu0 0.0
    %218 = vmatprep.subr.mxu0 0.0
    %219 = vmatpush1.xpose.msra.mxu0 0.0
    %220 = vmatprep.subr.mxu0 0.0
    %221 = vmatpush1.xpose.msra.mxu0 0.0
    %222 = vmatprep.subr.mxu0 0.0
    %223 = vmatpush1.xpose.msra.mxu0 0.0
    %224 = vmatprep.subr.mxu0 0.0
    %225 = vmatpush1.xpose.msra.mxu0 0.0
    %226 = vmatprep.subr.mxu0 0.0
    %227 = vmatpush1.xpose.msra.mxu0 0.0
    %228 = vmatprep.subr.mxu0 0.0
    %229 = vmatpush1.xpose.msra.mxu0 0.0
    %230 = vmatprep.subr.mxu0 0.0
    %231 = vmatpush1.xpose.msra.mxu0 0.0
    %232 = vmatprep.subr.mxu0 0.0
    %233 = vmatpush1.xpose.msra.mxu0 0.0
    %234 = vmatprep.subr.mxu0 0.0
    %235 = vmatpush1.xpose.msra.mxu0 0.0
    %236 = vmatprep.subr.mxu0 0.0
    %237 = vmatpush1.xpose.msra.mxu0 0.0
    %238 = vmatprep.subr.mxu0 0.0
    %239 = vmatpush1.xpose.msra.mxu0 0.0
    %240 = vmatprep.subr.mxu0 0.0
    %241 = vmatpush1.xpose.msra.mxu0 0.0
    %242 = vmatprep.subr.mxu0 0.0
    %243 = vmatpush1.xpose.msra.mxu0 0.0
    %244 = vmatprep.subr.mxu0 0.0
    %245 = vmatpush1.xpose.msra.mxu0 0.0
    %246 = vmatprep.subr.mxu0 0.0
    %247 = vmatpush1.xpose.msra.mxu0 0.0
    %248 = vmatprep.subr.mxu0 0.0
    %249 = vmatpush1.xpose.msra.mxu0 0.0
    %250 = vmatprep.subr.mxu0 0.0
    %251 = vmatpush1.xpose.msra.mxu0 0.0
    %252 = vmatprep.subr.mxu0 0.0
    %253 = vmatpush1.xpose.msra.mxu0 0.0
    %254 = vmatprep.subr.mxu0 0.0
    %255 = vmatpush1.xpose.msra.mxu0 0.0
    %256 = vmatprep.subr.mxu0 0.0
    %257 = vmatpush1.xpose.msra.mxu0 0.0
    %258 = vmatprep.subr.mxu0 0.0
    %259 = vmatpush1.xpose.msra.mxu0 0.0
    %260 = vmatprep.subr.mxu0 0.0
    %261 = vmatpush1.xpose.msra.mxu0 0.0
    %262 = vmatprep.subr.mxu0 0.0
    %263 = vmatpush1.xpose.msra.mxu0 0.0
    %264 = vmatprep.subr.mxu0 0.0
    %265 = vmatpush1.xpose.msra.mxu0 0.0
    %266 = vmatprep.subr.mxu0 0.0
    %267 = vmatpush1.xpose.msra.mxu0 0.0
    %268 = vmatprep.subr.mxu0 0.0
    %269 = vmatpush1.xpose.msra.mxu0 0.0
    %270 = vmatprep.subr.mxu0 0.0
    %271 = vmatpush1.xpose.msra.mxu0 0.0
    %272 = vmatprep.subr.mxu0 0.0
    %273 = vmatpush1.xpose.msra.mxu0 0.0
    %274 = vmatprep.subr.mxu0 0.0
    %275 = vmatpush1.xpose.msra.mxu0 0.0
    %276 = vmatprep.mubr.f32.mxu0 0.0
    %277 = vmatmul.mubr.f32.gmra.mrb[0].mxu0 %v210
    %v278 = vpop.f32.mrb[0].mxu0
    %v279 = vadd.f32 0.0, %v278
    %v280 = vpop.f32.mrb[0].mxu0
    %281 = vdwg.mxu0
    %283 = vset.pattern.permute.xlu0 0
    %284 = vperm.xlu0 %283, %v201
    %v285 = vpop.permute.xlu0 %284
    %288 = vset.pattern.permute.xlu0 0
    %289 = vperm.xlu0 %288, %v206
    %v290 = vpop.permute.xlu0 %289
    %v292 = vlaneseq
    %v293 = vshrl.u32 %v292, 7
    %v294 = vsub.s32 0, %v293
    %v295 = vrot.slane %v279, %v294
    %v296 = vadd.f32 %v285, %v295
    %v297 = vadd.f32 %v290, %v295
    %v298 = vmul.f32 %v296, 0.2
    %v299 = vmul.f32 %v297, 0.2
    %v300 = vmax.f32 %v296, %v298
    %v301 = vmax.f32 %v297, %v299
    %v302 = vadd.f32 %v300, %v25
    %v303 = vadd.f32 %v301, %v26
    %304 = vset.pattern.permute.xlu0 1
    %305 = vperm.xlu0 %304, %v201
    %v306 = vpop.permute.xlu0 %305
    %308 = vset.pattern.permute.xlu0 1
    %309 = vperm.xlu0 %308, %v206
    %v310 = vpop.permute.xlu0 %309
    %v312 = vlaneseq
    %v313 = vshrl.u32 %v312, 7
    %v314 = vsub.s32 1, %v313
    %v315 = vrot.slane %v279, %v314
    %v316 = vadd.f32 %v306, %v315
    %v317 = vadd.f32 %v310, %v315
    %v318 = vmul.f32 %v316, 0.2
    %v319 = vmul.f32 %v317, 0.2
    %v320 = vmax.f32 %v316, %v318
    %v321 = vmax.f32 %v317, %v319
    %v322 = vadd.f32 %v320, %v25
    %v323 = vadd.f32 %v321, %v26
    %324 = vset.pattern.permute.xlu0 2
    %325 = vperm.xlu0 %324, %v201
    %v326 = vpop.permute.xlu0 %325
    %328 = vset.pattern.permute.xlu0 2
    %329 = vperm.xlu0 %328, %v206
    %v330 = vpop.permute.xlu0 %329
    %v332 = vlaneseq
    %v333 = vshrl.u32 %v332, 7
    %v334 = vsub.s32 2, %v333
    %v335 = vrot.slane %v279, %v334
    %v336 = vadd.f32 %v326, %v335
    %v337 = vadd.f32 %v330, %v335
    %v338 = vmul.f32 %v336, 0.2
    %v339 = vmul.f32 %v337, 0.2
    %v340 = vmax.f32 %v336, %v338
    %v341 = vmax.f32 %v337, %v339
    %v342 = vadd.f32 %v340, %v25
    %v343 = vadd.f32 %v341, %v26
    %344 = vset.pattern.permute.xlu0 3
    %345 = vperm.xlu0 %344, %v201
    %v346 = vpop.permute.xlu0 %345
    %348 = vset.pattern.permute.xlu0 3
    %349 = vperm.xlu0 %348, %v206
    %v350 = vpop.permute.xlu0 %349
    %v352 = vlaneseq
    %v353 = vshrl.u32 %v352, 7
    %v354 = vsub.s32 3, %v353
    %v355 = vrot.slane %v279, %v354
    %v356 = vadd.f32 %v346, %v355
    %v357 = vadd.f32 %v350, %v355
    %v358 = vmul.f32 %v356, 0.2
    %v359 = vmul.f32 %v357, 0.2
    %v360 = vmax.f32 %v356, %v358
    %v361 = vmax.f32 %v357, %v359
    %v362 = vadd.f32 %v360, %v25
    %v363 = vadd.f32 %v361, %v26
    %vm364 = vcmask 130048
    %v365 = vsel %vm364, %v302, -inf
    %366 = vmax.xlane.f32.xlu0 %v365
    %v367 = vpop.xlane.xlu0 %366
    %v368 = vsel %vm364, %v303, -inf
    %369 = vmax.xlane.f32.xlu0 %v368
    %v370 = vpop.xlane.xlu0 %369
    %v371 = vsel %vm364, %v322, -inf
    %372 = vmax.xlane.f32.xlu0 %v371
    %v373 = vpop.xlane.xlu0 %372
    %v374 = vsel %vm364, %v323, -inf
    %375 = vmax.xlane.f32.xlu0 %v374
    %v376 = vpop.xlane.xlu0 %375
    %v377 = vsel %vm364, %v342, -inf
    %378 = vmax.xlane.f32.xlu0 %v377
    %v379 = vpop.xlane.xlu0 %378
    %v380 = vsel %vm364, %v343, -inf
    %381 = vmax.xlane.f32.xlu0 %v380
    %v382 = vpop.xlane.xlu0 %381
    %v383 = vsel %vm364, %v362, -inf
    %384 = vmax.xlane.f32.xlu0 %v383
    %v385 = vpop.xlane.xlu0 %384
    %v386 = vsel %vm364, %v363, -inf
    %387 = vmax.xlane.f32.xlu0 %v386
    %v388 = vpop.xlane.xlu0 %387
    %v389 = vsub.f32 %v302, %v367
    %v390 = vsub.f32 %v303, %v370
    %v391 = vsub.f32 %v322, %v373
    %v392 = vsub.f32 %v323, %v376
    %v393 = vsub.f32 %v342, %v379
    %v394 = vsub.f32 %v343, %v382
    %v395 = vsub.f32 %v362, %v385
    %v396 = vsub.f32 %v363, %v388
    %v397 = vmul.f32 %v389, 1.442695
    %v398 = vpow.pop %v397
    %v399 = vmul.f32 %v390, 1.442695
    %v400 = vpow.pop %v399
    %v401 = vmul.f32 %v391, 1.442695
    %v402 = vpow.pop %v401
    %v403 = vmul.f32 %v392, 1.442695
    %v404 = vpow.pop %v403
    %v405 = vmul.f32 %v393, 1.442695
    %v406 = vpow.pop %v405
    %v407 = vmul.f32 %v394, 1.442695
    %v408 = vpow.pop %v407
    %v409 = vmul.f32 %v395, 1.442695
    %v410 = vpow.pop %v409
    %v411 = vmul.f32 %v396, 1.442695
    %v412 = vpow.pop %v411
    %v413 = vsel %vm364, %v398, 0.0
    %414 = vadd.xlane.f32.xlu0 %v413
    %v415 = vpop.xlane.xlu0 %414
    %v416 = vsel %vm364, %v400, 0.0
    %417 = vadd.xlane.f32.xlu0 %v416
    %v418 = vpop.xlane.xlu0 %417
    %v419 = vsel %vm364, %v402, 0.0
    %420 = vadd.xlane.f32.xlu0 %v419
    %v421 = vpop.xlane.xlu0 %420
    %v422 = vsel %vm364, %v404, 0.0
    %423 = vadd.xlane.f32.xlu0 %v422
    %v424 = vpop.xlane.xlu0 %423
    %v425 = vsel %vm364, %v406, 0.0
    %426 = vadd.xlane.f32.xlu0 %v425
    %v427 = vpop.xlane.xlu0 %426
    %v428 = vsel %vm364, %v408, 0.0
    %429 = vadd.xlane.f32.xlu0 %v428
    %v430 = vpop.xlane.xlu0 %429
    %v431 = vsel %vm364, %v410, 0.0
    %432 = vadd.xlane.f32.xlu0 %v431
    %v433 = vpop.xlane.xlu0 %432
    %v434 = vsel %vm364, %v412, 0.0
    %435 = vadd.xlane.f32.xlu0 %v434
    %v436 = vpop.xlane.xlu0 %435
    %v437 = vrcp.pop %v415
    %v438 = vmul.f32 %v398, %v437
    %v439 = vrcp.pop %v418
    %v440 = vmul.f32 %v400, %v439
    %v441 = vrcp.pop %v421
    %v442 = vmul.f32 %v402, %v441
    %v443 = vrcp.pop %v424
    %v444 = vmul.f32 %v404, %v443
    %v445 = vrcp.pop %v427
    %v446 = vmul.f32 %v406, %v445
    %v447 = vrcp.pop %v430
    %v448 = vmul.f32 %v408, %v447
    %v449 = vrcp.pop %v433
    %v450 = vmul.f32 %v410, %v449
    %v451 = vrcp.pop %v436
    %v452 = vmul.f32 %v412, %v451
    %v454 = vsel %vm364, %v438, 0
    %v457 = vsel %vm364, %v440, 0
    %459 = vmatprep.subr.mxu0 0.0
    %460 = vmatpush1.msra.mxu0 %v119
    %461 = vmatprep.subr.mxu0 0.0
    %462 = vmatpush1.msra.mxu0 %v124
    %463 = vmatprep.subr.mxu0 0.0
    %464 = vmatpush1.msra.mxu0 0.0
    %465 = vmatprep.subr.mxu0 0.0
    %466 = vmatpush1.msra.mxu0 0.0
    %467 = vmatprep.subr.mxu0 0.0
    %468 = vmatpush1.msra.mxu0 0.0
    %469 = vmatprep.subr.mxu0 0.0
    %470 = vmatpush1.msra.mxu0 0.0
    %471 = vmatprep.subr.mxu0 0.0
    %472 = vmatpush1.msra.mxu0 0.0
    %473 = vmatprep.subr.mxu0 0.0
    %474 = vmatpush1.msra.mxu0 0.0
    %475 = vmatprep.subr.mxu0 0.0
    %476 = vmatpush1.msra.mxu0 0.0
    %477 = vmatprep.subr.mxu0 0.0
    %478 = vmatpush1.msra.mxu0 0.0
    %479 = vmatprep.subr.mxu0 0.0
    %480 = vmatpush1.msra.mxu0 0.0
    %481 = vmatprep.subr.mxu0 0.0
    %482 = vmatpush1.msra.mxu0 0.0
    %483 = vmatprep.subr.mxu0 0.0
    %484 = vmatpush1.msra.mxu0 0.0
    %485 = vmatprep.subr.mxu0 0.0
    %486 = vmatpush1.msra.mxu0 0.0
    %487 = vmatprep.subr.mxu0 0.0
    %488 = vmatpush1.msra.mxu0 0.0
    %489 = vmatprep.subr.mxu0 0.0
    %490 = vmatpush1.msra.mxu0 0.0
    %491 = vmatprep.subr.mxu0 0.0
    %492 = vmatpush1.msra.mxu0 0.0
    %493 = vmatprep.subr.mxu0 0.0
    %494 = vmatpush1.msra.mxu0 0.0
    %495 = vmatprep.subr.mxu0 0.0
    %496 = vmatpush1.msra.mxu0 0.0
    %497 = vmatprep.subr.mxu0 0.0
    %498 = vmatpush1.msra.mxu0 0.0
    %499 = vmatprep.subr.mxu0 0.0
    %500 = vmatpush1.msra.mxu0 0.0
    %501 = vmatprep.subr.mxu0 0.0
    %502 = vmatpush1.msra.mxu0 0.0
    %503 = vmatprep.subr.mxu0 0.0
    %504 = vmatpush1.msra.mxu0 0.0
    %505 = vmatprep.subr.mxu0 0.0
    %506 = vmatpush1.msra.mxu0 0.0
    %507 = vmatprep.subr.mxu0 0.0
    %508 = vmatpush1.msra.mxu0 0.0
    %509 = vmatprep.subr.mxu0 0.0
    %510 = vmatpush1.msra.mxu0 0.0
    %511 = vmatprep.subr.mxu0 0.0
    %512 = vmatpush1.msra.mxu0 0.0
    %513 = vmatprep.subr.mxu0 0.0
    %514 = vmatpush1.msra.mxu0 0.0
    %515 = vmatprep.subr.mxu0 0.0
    %516 = vmatpush1.msra.mxu0 0.0
    %517 = vmatprep.subr.mxu0 0.0
    %518 = vmatpush1.msra.mxu0 0.0
    %519 = vmatprep.subr.mxu0 0.0
    %520 = vmatpush1.msra.mxu0 0.0
    %521 = vmatprep.subr.mxu0 0.0
    %522 = vmatpush1.msra.mxu0 0.0
    %523 = vmatprep.mubr.f32.mxu0 0.0
    %524 = vmatmul.mubr.f32.gmra.mrb[0].mxu0 %v454
    %v525 = vpop.f32.mrb[0].mxu0
    %v526 = vadd.f32 0.0, %v525
    %v527 = vpop.f32.mrb[0].mxu0
    %528 = vmatprep.mubr.f32.mxu0 0.0
    %529 = vmatmul.mubr.f32.gmra.mrb[0].mxu0 %v457
    %v530 = vpop.f32.mrb[0].mxu0
    %v531 = vadd.f32 0.0, %v530
    %v532 = vpop.f32.mrb[0].mxu0
    %533 = vdwg.mxu0
    %534 = vrot.lane.b32.xlu0 %v119, 120
    %v535 = vpop.permute.xlu0 %534
    %536 = vrot.lane.b32.xlu0 %v124, 120
    %v537 = vpop.permute.xlu0 %536
    %v541 = vsel %vm364, %v442, 0
    %v544 = vsel %vm364, %v444, 0
    %546 = vmatprep.subr.mxu0 0.0
    %547 = vmatpush1.msra.mxu0 %v535
    %548 = vmatprep.subr.mxu0 0.0
    %549 = vmatpush1.msra.mxu0 %v537
    %550 = vmatprep.subr.mxu0 0.0
    %551 = vmatpush1.msra.mxu0 0.0
    %552 = vmatprep.subr.mxu0 0.0
    %553 = vmatpush1.msra.mxu0 0.0
    %554 = vmatprep.subr.mxu0 0.0
    %555 = vmatpush1.msra.mxu0 0.0
    %556 = vmatprep.subr.mxu0 0.0
    %557 = vmatpush1.msra.mxu0 0.0
    %558 = vmatprep.subr.mxu0 0.0
    %559 = vmatpush1.msra.mxu0 0.0
    %560 = vmatprep.subr.mxu0 0.0
    %561 = vmatpush1.msra.mxu0 0.0
    %562 = vmatprep.subr.mxu0 0.0
    %563 = vmatpush1.msra.mxu0 0.0
    %564 = vmatprep.subr.mxu0 0.0
    %565 = vmatpush1.msra.mxu0 0.0
    %566 = vmatprep.subr.mxu0 0.0
    %567 = vmatpush1.msra.mxu0 0.0
    %568 = vmatprep.subr.mxu0 0.0
    %569 = vmatpush1.msra.mxu0 0.0
    %570 = vmatprep.subr.mxu0 0.0
    %571 = vmatpush1.msra.mxu0 0.0
    %572 = vmatprep.subr.mxu0 0.0
    %573 = vmatpush1.msra.mxu0 0.0
    %574 = vmatprep.subr.mxu0 0.0
    %575 = vmatpush1.msra.mxu0 0.0
    %576 = vmatprep.subr.mxu0 0.0
    %577 = vmatpush1.msra.mxu0 0.0
    %578 = vmatprep.subr.mxu0 0.0
    %579 = vmatpush1.msra.mxu0 0.0
    %580 = vmatprep.subr.mxu0 0.0
    %581 = vmatpush1.msra.mxu0 0.0
    %582 = vmatprep.subr.mxu0 0.0
    %583 = vmatpush1.msra.mxu0 0.0
    %584 = vmatprep.subr.mxu0 0.0
    %585 = vmatpush1.msra.mxu0 0.0
    %586 = vmatprep.subr.mxu0 0.0
    %587 = vmatpush1.msra.mxu0 0.0
    %588 = vmatprep.subr.mxu0 0.0
    %589 = vmatpush1.msra.mxu0 0.0
    %590 = vmatprep.subr.mxu0 0.0
    %591 = vmatpush1.msra.mxu0 0.0
    %592 = vmatprep.subr.mxu0 0.0
    %593 = vmatpush1.msra.mxu0 0.0
    %594 = vmatprep.subr.mxu0 0.0
    %595 = vmatpush1.msra.mxu0 0.0
    %596 = vmatprep.subr.mxu0 0.0
    %597 = vmatpush1.msra.mxu0 0.0
    %598 = vmatprep.subr.mxu0 0.0
    %599 = vmatpush1.msra.mxu0 0.0
    %600 = vmatprep.subr.mxu0 0.0
    %601 = vmatpush1.msra.mxu0 0.0
    %602 = vmatprep.subr.mxu0 0.0
    %603 = vmatpush1.msra.mxu0 0.0
    %604 = vmatprep.subr.mxu0 0.0
    %605 = vmatpush1.msra.mxu0 0.0
    %606 = vmatprep.subr.mxu0 0.0
    %607 = vmatpush1.msra.mxu0 0.0
    %608 = vmatprep.subr.mxu0 0.0
    %609 = vmatpush1.msra.mxu0 0.0
    %610 = vmatprep.mubr.f32.mxu0 0.0
    %611 = vmatmul.mubr.f32.gmra.mrb[0].mxu0 %v541
    %v612 = vpop.f32.mrb[0].mxu0
    %v613 = vadd.f32 0.0, %v612
    %v614 = vpop.f32.mrb[0].mxu0
    %615 = vmatprep.mubr.f32.mxu0 0.0
    %616 = vmatmul.mubr.f32.gmra.mrb[0].mxu0 %v544
    %v617 = vpop.f32.mrb[0].mxu0
    %v618 = vadd.f32 0.0, %v617
    %v619 = vpop.f32.mrb[0].mxu0
    %620 = vdwg.mxu0
    %621 = vrot.lane.b32.xlu0 %v119, 112
    %v622 = vpop.permute.xlu0 %621
    %623 = vrot.lane.b32.xlu0 %v124, 112
    %v624 = vpop.permute.xlu0 %623
    %v628 = vsel %vm364, %v446, 0
    %v631 = vsel %vm364, %v448, 0
    %633 = vmatprep.subr.mxu0 0.0
    %634 = vmatpush1.msra.mxu0 %v622
    %635 = vmatprep.subr.mxu0 0.0
    %636 = vmatpush1.msra.mxu0 %v624
    %637 = vmatprep.subr.mxu0 0.0
    %638 = vmatpush1.msra.mxu0 0.0
    %639 = vmatprep.subr.mxu0 0.0
    %640 = vmatpush1.msra.mxu0 0.0
    %641 = vmatprep.subr.mxu0 0.0
    %642 = vmatpush1.msra.mxu0 0.0
    %643 = vmatprep.subr.mxu0 0.0
    %644 = vmatpush1.msra.mxu0 0.0
    %645 = vmatprep.subr.mxu0 0.0
    %646 = vmatpush1.msra.mxu0 0.0
    %647 = vmatprep.subr.mxu0 0.0
    %648 = vmatpush1.msra.mxu0 0.0
    %649 = vmatprep.subr.mxu0 0.0
    %650 = vmatpush1.msra.mxu0 0.0
    %651 = vmatprep.subr.mxu0 0.0
    %652 = vmatpush1.msra.mxu0 0.0
    %653 = vmatprep.subr.mxu0 0.0
    %654 = vmatpush1.msra.mxu0 0.0
    %655 = vmatprep.subr.mxu0 0.0
    %656 = vmatpush1.msra.mxu0 0.0
    %657 = vmatprep.subr.mxu0 0.0
    %658 = vmatpush1.msra.mxu0 0.0
    %659 = vmatprep.subr.mxu0 0.0
    %660 = vmatpush1.msra.mxu0 0.0
    %661 = vmatprep.subr.mxu0 0.0
    %662 = vmatpush1.msra.mxu0 0.0
    %663 = vmatprep.subr.mxu0 0.0
    %664 = vmatpush1.msra.mxu0 0.0
    %665 = vmatprep.subr.mxu0 0.0
    %666 = vmatpush1.msra.mxu0 0.0
    %667 = vmatprep.subr.mxu0 0.0
    %668 = vmatpush1.msra.mxu0 0.0
    %669 = vmatprep.subr.mxu0 0.0
    %670 = vmatpush1.msra.mxu0 0.0
    %671 = vmatprep.subr.mxu0 0.0
    %672 = vmatpush1.msra.mxu0 0.0
    %673 = vmatprep.subr.mxu0 0.0
    %674 = vmatpush1.msra.mxu0 0.0
    %675 = vmatprep.subr.mxu0 0.0
    %676 = vmatpush1.msra.mxu0 0.0
    %677 = vmatprep.subr.mxu0 0.0
    %678 = vmatpush1.msra.mxu0 0.0
    %679 = vmatprep.subr.mxu0 0.0
    %680 = vmatpush1.msra.mxu0 0.0
    %681 = vmatprep.subr.mxu0 0.0
    %682 = vmatpush1.msra.mxu0 0.0
    %683 = vmatprep.subr.mxu0 0.0
    %684 = vmatpush1.msra.mxu0 0.0
    %685 = vmatprep.subr.mxu0 0.0
    %686 = vmatpush1.msra.mxu0 0.0
    %687 = vmatprep.subr.mxu0 0.0
    %688 = vmatpush1.msra.mxu0 0.0
    %689 = vmatprep.subr.mxu0 0.0
    %690 = vmatpush1.msra.mxu0 0.0
    %691 = vmatprep.subr.mxu0 0.0
    %692 = vmatpush1.msra.mxu0 0.0
    %693 = vmatprep.subr.mxu0 0.0
    %694 = vmatpush1.msra.mxu0 0.0
    %695 = vmatprep.subr.mxu0 0.0
    %696 = vmatpush1.msra.mxu0 0.0
    %697 = vmatprep.mubr.f32.mxu0 0.0
    %698 = vmatmul.mubr.f32.gmra.mrb[0].mxu0 %v628
    %v699 = vpop.f32.mrb[0].mxu0
    %v700 = vadd.f32 0.0, %v699
    %v701 = vpop.f32.mrb[0].mxu0
    %702 = vmatprep.mubr.f32.mxu0 0.0
    %703 = vmatmul.mubr.f32.gmra.mrb[0].mxu0 %v631
    %v704 = vpop.f32.mrb[0].mxu0
    %v705 = vadd.f32 0.0, %v704
    %v706 = vpop.f32.mrb[0].mxu0
    %707 = vdwg.mxu0
    %708 = vrot.lane.b32.xlu0 %v119, 104
    %v709 = vpop.permute.xlu0 %708
    %710 = vrot.lane.b32.xlu0 %v124, 104
    %v711 = vpop.permute.xlu0 %710
    %v715 = vsel %vm364, %v450, 0
    %v718 = vsel %vm364, %v452, 0
    %720 = vmatprep.subr.mxu0 0.0
    %721 = vmatpush1.msra.mxu0 %v709
    %722 = vmatprep.subr.mxu0 0.0
    %723 = vmatpush1.msra.mxu0 %v711
    %724 = vmatprep.subr.mxu0 0.0
    %725 = vmatpush1.msra.mxu0 0.0
    %726 = vmatprep.subr.mxu0 0.0
    %727 = vmatpush1.msra.mxu0 0.0
    %728 = vmatprep.subr.mxu0 0.0
    %729 = vmatpush1.msra.mxu0 0.0
    %730 = vmatprep.subr.mxu0 0.0
    %731 = vmatpush1.msra.mxu0 0.0
    %732 = vmatprep.subr.mxu0 0.0
    %733 = vmatpush1.msra.mxu0 0.0
    %734 = vmatprep.subr.mxu0 0.0
    %735 = vmatpush1.msra.mxu0 0.0
    %736 = vmatprep.subr.mxu0 0.0
    %737 = vmatpush1.msra.mxu0 0.0
    %738 = vmatprep.subr.mxu0 0.0
    %739 = vmatpush1.msra.mxu0 0.0
    %740 = vmatprep.subr.mxu0 0.0
    %741 = vmatpush1.msra.mxu0 0.0
    %742 = vmatprep.subr.mxu0 0.0
    %743 = vmatpush1.msra.mxu0 0.0
    %744 = vmatprep.subr.mxu0 0.0
    %745 = vmatpush1.msra.mxu0 0.0
    %746 = vmatprep.subr.mxu0 0.0
    %747 = vmatpush1.msra.mxu0 0.0
    %748 = vmatprep.subr.mxu0 0.0
    %749 = vmatpush1.msra.mxu0 0.0
    %750 = vmatprep.subr.mxu0 0.0
    %751 = vmatpush1.msra.mxu0 0.0
    %752 = vmatprep.subr.mxu0 0.0
    %753 = vmatpush1.msra.mxu0 0.0
    %754 = vmatprep.subr.mxu0 0.0
    %755 = vmatpush1.msra.mxu0 0.0
    %756 = vmatprep.subr.mxu0 0.0
    %757 = vmatpush1.msra.mxu0 0.0
    %758 = vmatprep.subr.mxu0 0.0
    %759 = vmatpush1.msra.mxu0 0.0
    %760 = vmatprep.subr.mxu0 0.0
    %761 = vmatpush1.msra.mxu0 0.0
    %762 = vmatprep.subr.mxu0 0.0
    %763 = vmatpush1.msra.mxu0 0.0
    %764 = vmatprep.subr.mxu0 0.0
    %765 = vmatpush1.msra.mxu0 0.0
    %766 = vmatprep.subr.mxu0 0.0
    %767 = vmatpush1.msra.mxu0 0.0
    %768 = vmatprep.subr.mxu0 0.0
    %769 = vmatpush1.msra.mxu0 0.0
    %770 = vmatprep.subr.mxu0 0.0
    %771 = vmatpush1.msra.mxu0 0.0
    %772 = vmatprep.subr.mxu0 0.0
    %773 = vmatpush1.msra.mxu0 0.0
    %774 = vmatprep.subr.mxu0 0.0
    %775 = vmatpush1.msra.mxu0 0.0
    %776 = vmatprep.subr.mxu0 0.0
    %777 = vmatpush1.msra.mxu0 0.0
    %778 = vmatprep.subr.mxu0 0.0
    %779 = vmatpush1.msra.mxu0 0.0
    %780 = vmatprep.subr.mxu0 0.0
    %781 = vmatpush1.msra.mxu0 0.0
    %782 = vmatprep.subr.mxu0 0.0
    %783 = vmatpush1.msra.mxu0 0.0
    %784 = vmatprep.mubr.f32.mxu0 0.0
    %785 = vmatmul.mubr.f32.gmra.mrb[0].mxu0 %v715
    %v786 = vpop.f32.mrb[0].mxu0
    %v787 = vadd.f32 0.0, %v786
    %v788 = vpop.f32.mrb[0].mxu0
    %789 = vmatprep.mubr.f32.mxu0 0.0
    %790 = vmatmul.mubr.f32.gmra.mrb[0].mxu0 %v718
    %v791 = vpop.f32.mrb[0].mxu0
    %v792 = vadd.f32 0.0, %v791
    %v793 = vpop.f32.mrb[0].mxu0
    %794 = vdwg.mxu0
    %797 = vrot.lane.b32.xlu0 %v613, 8
    %v798 = vpop.permute.xlu0 %797
    %799 = vrot.lane.b32.xlu0 %v618, 8
    %v800 = vpop.permute.xlu0 %799
    %805 = vrot.lane.b32.xlu0 %v700, 16
    %v806 = vpop.permute.xlu0 %805
    %807 = vrot.lane.b32.xlu0 %v705, 16
    %v808 = vpop.permute.xlu0 %807
    %813 = vrot.lane.b32.xlu0 %v787, 24
    %v814 = vpop.permute.xlu0 %813
    %815 = vrot.lane.b32.xlu0 %v792, 24
    %v816 = vpop.permute.xlu0 %815
    %v819 = vsel %vm45, %v526, %v798
    %v820 = vsel %vm45, %v531, %v800
    %v821 = vsel %vm364, %v819, %v806
    %v822 = vsel %vm364, %v820, %v808
    %vm823 = vcmask 195584
    %v824 = vsel %vm823, %v821, %v814
    %v825 = vsel %vm823, %v822, %v816
    %v826 = vlaneseq
    %v827 = vshrl.u32 %v826, 7
    %v828 = vsub.s32 0, %v827
    %v829 = vrot.slane %v40, %v828
    %v830 = vadd.f32 %v824, %v829
    %v831 = vadd.f32 %v825, %v829
    %v832 = vmax.f32 %v830, 0.0
    %v833 = vmax.f32 %v831, 0.0
    %v835 = vsel %vm127, %v832, 0
    %v838 = vsel %vm127, %v833, 0
    %840 = vmatprep.subr.mxu0 0.0
    %841 = vmatpush1.msra.mxu0 %v35
    %842 = vmatprep.subr.mxu0 0.0
    %843 = vmatpush1.msra.mxu0 %v36
    %844 = vmatprep.subr.mxu0 0.0
    %845 = vmatpush1.msra.mxu0 %v37
    %846 = vmatprep.subr.mxu0 0.0
    %847 = vmatpush1.msra.mxu0 %v38
    %848 = vmatprep.subr.mxu0 0.0
    %849 = vmatpush1.msra.mxu0 0.0
    %850 = vmatprep.subr.mxu0 0.0
    %851 = vmatpush1.msra.mxu0 0.0
    %852 = vmatprep.subr.mxu0 0.0
    %853 = vmatpush1.msra.mxu0 0.0
    %854 = vmatprep.subr.mxu0 0.0
    %855 = vmatpush1.msra.mxu0 0.0
    %856 = vmatprep.subr.mxu0 0.0
    %857 = vmatpush1.msra.mxu0 0.0
    %858 = vmatprep.subr.mxu0 0.0
    %859 = vmatpush1.msra.mxu0 0.0
    %860 = vmatprep.subr.mxu0 0.0
    %861 = vmatpush1.msra.mxu0 0.0
    %862 = vmatprep.subr.mxu0 0.0
    %863 = vmatpush1.msra.mxu0 0.0
    %864 = vmatprep.subr.mxu0 0.0
    %865 = vmatpush1.msra.mxu0 0.0
    %866 = vmatprep.subr.mxu0 0.0
    %867 = vmatpush1.msra.mxu0 0.0
    %868 = vmatprep.subr.mxu0 0.0
    %869 = vmatpush1.msra.mxu0 0.0
    %870 = vmatprep.subr.mxu0 0.0
    %871 = vmatpush1.msra.mxu0 0.0
    %872 = vmatprep.subr.mxu0 0.0
    %873 = vmatpush1.msra.mxu0 0.0
    %874 = vmatprep.subr.mxu0 0.0
    %875 = vmatpush1.msra.mxu0 0.0
    %876 = vmatprep.subr.mxu0 0.0
    %877 = vmatpush1.msra.mxu0 0.0
    %878 = vmatprep.subr.mxu0 0.0
    %879 = vmatpush1.msra.mxu0 0.0
    %880 = vmatprep.subr.mxu0 0.0
    %881 = vmatpush1.msra.mxu0 0.0
    %882 = vmatprep.subr.mxu0 0.0
    %883 = vmatpush1.msra.mxu0 0.0
    %884 = vmatprep.subr.mxu0 0.0
    %885 = vmatpush1.msra.mxu0 0.0
    %886 = vmatprep.subr.mxu0 0.0
    %887 = vmatpush1.msra.mxu0 0.0
    %888 = vmatprep.subr.mxu0 0.0
    %889 = vmatpush1.msra.mxu0 0.0
    %890 = vmatprep.subr.mxu0 0.0
    %891 = vmatpush1.msra.mxu0 0.0
    %892 = vmatprep.subr.mxu0 0.0
    %893 = vmatpush1.msra.mxu0 0.0
    %894 = vmatprep.subr.mxu0 0.0
    %895 = vmatpush1.msra.mxu0 0.0
    %896 = vmatprep.subr.mxu0 0.0
    %897 = vmatpush1.msra.mxu0 0.0
    %898 = vmatprep.subr.mxu0 0.0
    %899 = vmatpush1.msra.mxu0 0.0
    %900 = vmatprep.subr.mxu0 0.0
    %901 = vmatpush1.msra.mxu0 0.0
    %902 = vmatprep.subr.mxu0 0.0
    %903 = vmatpush1.msra.mxu0 0.0
    %904 = vmatprep.mubr.f32.mxu0 0.0
    %905 = vmatmul.mubr.f32.gmra.mrb[0].mxu0 %v835
    %v906 = vpop.f32.mrb[0].mxu0
    %v907 = vadd.f32 0.0, %v906
    %v908 = vpop.f32.mrb[0].mxu0
    %909 = vmatprep.mubr.f32.mxu0 0.0
    %910 = vmatmul.mubr.f32.gmra.mrb[0].mxu0 %v838
    %v911 = vpop.f32.mrb[0].mxu0
    %v912 = vadd.f32 0.0, %v911
    %v913 = vpop.f32.mrb[0].mxu0
    %914 = vdwg.mxu0
    %v915 = vlaneseq
    %v916 = vshrl.u32 %v915, 7
    %v917 = vsub.s32 0, %v916
    %v918 = vrot.slane %v42, %v917
    %v919 = vmul.f32 %v907, %v918
    %v920 = vmul.f32 %v912, %v918
    %v921 = vsel %vm45, %v919, 0.0
    %922 = vadd.xlane.f32.xlu0 %v921
    %v923 = vpop.xlane.xlu0 %922
    %v924 = vsel %vm45, %v920, 0.0
    %925 = vadd.xlane.f32.xlu0 %v924
    %v926 = vpop.xlane.xlu0 %925
    %v928 = vsel %vm45, %v43, 0
    %v931 = vsel %vm45, %v907, 0
    %v934 = vsel %vm45, %v912, 0
    %936 = vmatprep.subr.mxu0 0.0
    %937 = vmatpush1.xpose.msra.mxu0 %v931
    %938 = vmatprep.subr.mxu0 0.0
    %939 = vmatpush1.xpose.msra.mxu0 %v934
    %940 = vmatprep.subr.mxu0 0.0
    %941 = vmatpush1.xpose.msra.mxu0 0.0
    %942 = vmatprep.subr.mxu0 0.0
    %943 = vmatpush1.xpose.msra.mxu0 0.0
    %944 = vmatprep.subr.mxu0 0.0
    %945 = vmatpush1.xpose.msra.mxu0 0.0
    %946 = vmatprep.subr.mxu0 0.0
    %947 = vmatpush1.xpose.msra.mxu0 0.0
    %948 = vmatprep.subr.mxu0 0.0
    %949 = vmatpush1.xpose.msra.mxu0 0.0
    %950 = vmatprep.subr.mxu0 0.0
    %951 = vmatpush1.xpose.msra.mxu0 0.0
    %952 = vmatprep.subr.mxu0 0.0
    %953 = vmatpush1.xpose.msra.mxu0 0.0
    %954 = vmatprep.subr.mxu0 0.0
    %955 = vmatpush1.xpose.msra.mxu0 0.0
    %956 = vmatprep.subr.mxu0 0.0
    %957 = vmatpush1.xpose.msra.mxu0 0.0
    %958 = vmatprep.subr.mxu0 0.0
    %959 = vmatpush1.xpose.msra.mxu0 0.0
    %960 = vmatprep.subr.mxu0 0.0
    %961 = vmatpush1.xpose.msra.mxu0 0.0
    %962 = vmatprep.subr.mxu0 0.0
    %963 = vmatpush1.xpose.msra.mxu0 0.0
    %964 = vmatprep.subr.mxu0 0.0
    %965 = vmatpush1.xpose.msra.mxu0 0.0
    %966 = vmatprep.subr.mxu0 0.0
    %967 = vmatpush1.xpose.msra.mxu0 0.0
    %968 = vmatprep.subr.mxu0 0.0
    %969 = vmatpush1.xpose.msra.mxu0 0.0
    %970 = vmatprep.subr.mxu0 0.0
    %971 = vmatpush1.xpose.msra.mxu0 0.0
    %972 = vmatprep.subr.mxu0 0.0
    %973 = vmatpush1.xpose.msra.mxu0 0.0
    %974 = vmatprep.subr.mxu0 0.0
    %975 = vmatpush1.xpose.msra.mxu0 0.0
    %976 = vmatprep.subr.mxu0 0.0
    %977 = vmatpush1.xpose.msra.mxu0 0.0
    %978 = vmatprep.subr.mxu0 0.0
    %979 = vmatpush1.xpose.msra.mxu0 0.0
    %980 = vmatprep.subr.mxu0 0.0
    %981 = vmatpush1.xpose.msra.mxu0 0.0
    %982 = vmatprep.subr.mxu0 0.0
    %983 = vmatpush1.xpose.msra.mxu0 0.0
    %984 = vmatprep.subr.mxu0 0.0
    %985 = vmatpush1.xpose.msra.mxu0 0.0
    %986 = vmatprep.subr.mxu0 0.0
    %987 = vmatpush1.xpose.msra.mxu0 0.0
    %988 = vmatprep.subr.mxu0 0.0
    %989 = vmatpush1.xpose.msra.mxu0 0.0
    %990 = vmatprep.subr.mxu0 0.0
    %991 = vmatpush1.xpose.msra.mxu0 0.0
    %992 = vmatprep.subr.mxu0 0.0
    %993 = vmatpush1.xpose.msra.mxu0 0.0
    %994 = vmatprep.subr.mxu0 0.0
    %995 = vmatpush1.xpose.msra.mxu0 0.0
    %996 = vmatprep.subr.mxu0 0.0
    %997 = vmatpush1.xpose.msra.mxu0 0.0
    %998 = vmatprep.subr.mxu0 0.0
    %999 = vmatpush1.xpose.msra.mxu0 0.0
    %1000 = vmatprep.mubr.f32.mxu0 0.0
    %1001 = vmatmul.mubr.f32.gmra.mrb[0].mxu0 %v928
    %v1002 = vpop.f32.mrb[0].mxu0
    %v1003 = vadd.f32 0.0, %v1002
    %v1004 = vpop.f32.mrb[0].mxu0
    %1005 = vdwg.mxu0
    %v1006 = vlaneseq
    %v1007 = vshrl.u32 %v1006, 7
    %v1008 = vsub.s32 0, %v1007
    %v1009 = vrot.slane %v1003, %v1008
    %v1010 = vadd.f32 %v923, %v1009
    %v1011 = vadd.f32 %v926, %v1009
    %v1012 = vmul.f32 %v1010, 0.2
    %v1013 = vmul.f32 %v1011, 0.2
    %v1014 = vmax.f32 %v1010, %v1012
    %v1015 = vmax.f32 %v1011, %v1013
    %v1016 = vadd.f32 %v1014, %v25
    %v1017 = vadd.f32 %v1015, %v26
    %v1018 = vsel %vm364, %v1016, -inf
    %1019 = vmax.xlane.f32.xlu0 %v1018
    %v1020 = vpop.xlane.xlu0 %1019
    %v1021 = vsel %vm364, %v1017, -inf
    %1022 = vmax.xlane.f32.xlu0 %v1021
    %v1023 = vpop.xlane.xlu0 %1022
    %v1024 = vsub.f32 %v1016, %v1020
    %v1025 = vsub.f32 %v1017, %v1023
    %v1026 = vmul.f32 %v1024, 1.442695
    %v1027 = vpow.pop %v1026
    %v1028 = vmul.f32 %v1025, 1.442695
    %v1029 = vpow.pop %v1028
    %v1030 = vsel %vm364, %v1027, 0.0
    %1031 = vadd.xlane.f32.xlu0 %v1030
    %v1032 = vpop.xlane.xlu0 %1031
    %v1033 = vsel %vm364, %v1029, 0.0
    %1034 = vadd.xlane.f32.xlu0 %v1033
    %v1035 = vpop.xlane.xlu0 %1034
    %v1036 = vrcp.pop %v1032
    %v1037 = vmul.f32 %v1027, %v1036
    %v1038 = vrcp.pop %v1035
    %v1039 = vmul.f32 %v1029, %v1038
    %v1040 = vlaneseq
    %v1041 = vshrl.u32 %v1040, 7
    %v1042 = vsub.s32 0, %v1041
    %v1043 = vrot.slane %v41, %v1042
    %v1045 = vsel %vm364, %v1037, 0
    %v1048 = vsel %vm364, %v1039, 0
    %1050 = vmatprep.subr.mxu0 0.0
    %1051 = vmatpush1.msra.mxu0 %v907
    %1052 = vmatprep.subr.mxu0 0.0
    %1053 = vmatpush1.msra.mxu0 %v912
    %1054 = vmatprep.subr.mxu0 0.0
    %1055 = vmatpush1.msra.mxu0 0.0
    %1056 = vmatprep.subr.mxu0 0.0
    %1057 = vmatpush1.msra.mxu0 0.0
    %1058 = vmatprep.subr.mxu0 0.0
    %1059 = vmatpush1.msra.mxu0 0.0
    %1060 = vmatprep.subr.mxu0 0.0
    %1061 = vmatpush1.msra.mxu0 0.0
    %1062 = vmatprep.subr.mxu0 0.0
    %1063 = vmatpush1.msra.mxu0 0.0
    %1064 = vmatprep.subr.mxu0 0.0
    %1065 = vmatpush1.msra.mxu0 0.0
    %1066 = vmatprep.subr.mxu0 0.0
    %1067 = vmatpush1.msra.mxu0 0.0
    %1068 = vmatprep.subr.mxu0 0.0
    %1069 = vmatpush1.msra.mxu0 0.0
    %1070 = vmatprep.subr.mxu0 0.0
    %1071 = vmatpush1.msra.mxu0 0.0
    %1072 = vmatprep.subr.mxu0 0.0
    %1073 = vmatpush1.msra.mxu0 0.0
    %1074 = vmatprep.subr.mxu0 0.0
    %1075 = vmatpush1.msra.mxu0 0.0
    %1076 = vmatprep.subr.mxu0 0.0
    %1077 = vmatpush1.msra.mxu0 0.0
    %1078 = vmatprep.subr.mxu0 0.0
    %1079 = vmatpush1.msra.mxu0 0.0
    %1080 = vmatprep.subr.mxu0 0.0
    %1081 = vmatpush1.msra.mxu0 0.0
    %1082 = vmatprep.subr.mxu0 0.0
    %1083 = vmatpush1.msra.mxu0 0.0
    %1084 = vmatprep.subr.mxu0 0.0
    %1085 = vmatpush1.msra.mxu0 0.0
    %1086 = vmatprep.subr.mxu0 0.0
    %1087 = vmatpush1.msra.mxu0 0.0
    %1088 = vmatprep.subr.mxu0 0.0
    %1089 = vmatpush1.msra.mxu0 0.0
    %1090 = vmatprep.subr.mxu0 0.0
    %1091 = vmatpush1.msra.mxu0 0.0
    %1092 = vmatprep.subr.mxu0 0.0
    %1093 = vmatpush1.msra.mxu0 0.0
    %1094 = vmatprep.subr.mxu0 0.0
    %1095 = vmatpush1.msra.mxu0 0.0
    %1096 = vmatprep.subr.mxu0 0.0
    %1097 = vmatpush1.msra.mxu0 0.0
    %1098 = vmatprep.subr.mxu0 0.0
    %1099 = vmatpush1.msra.mxu0 0.0
    %1100 = vmatprep.subr.mxu0 0.0
    %1101 = vmatpush1.msra.mxu0 0.0
    %1102 = vmatprep.subr.mxu0 0.0
    %1103 = vmatpush1.msra.mxu0 0.0
    %1104 = vmatprep.subr.mxu0 0.0
    %1105 = vmatpush1.msra.mxu0 0.0
    %1106 = vmatprep.subr.mxu0 0.0
    %1107 = vmatpush1.msra.mxu0 0.0
    %1108 = vmatprep.subr.mxu0 0.0
    %1109 = vmatpush1.msra.mxu0 0.0
    %1110 = vmatprep.subr.mxu0 0.0
    %1111 = vmatpush1.msra.mxu0 0.0
    %1112 = vmatprep.subr.mxu0 0.0
    %1113 = vmatpush1.msra.mxu0 0.0
    %1114 = vmatprep.mubr.f32.mxu0 0.0
    %1115 = vmatmul.mubr.f32.gmra.mrb[0].mxu0 %v1045
    %v1116 = vpop.f32.mrb[0].mxu0
    %v1117 = vadd.f32 %v1043, %v1116
    %v1118 = vpop.f32.mrb[0].mxu0
    %1119 = vmatprep.mubr.f32.mxu0 0.0
    %1120 = vmatmul.mubr.f32.gmra.mrb[0].mxu0 %v1048
    %v1121 = vpop.f32.mrb[0].mxu0
    %v1122 = vadd.f32 %v1043, %v1121
    %v1123 = vpop.f32.mrb[0].mxu0
    %1124 = vdwg.mxu0
    %v1125 = vmax.f32 %v1117, 0.0
    %v1126 = vmax.f32 %v1122, 0.0
    %v1128 = vsel %vm364, %v27, 0
    %v1131 = vsel %vm364, %v28, 0
    %1133 = vmatprep.subr.mxu0 0.0
    %1134 = vmatpush1.msra.mxu0 %v1125
    %1135 = vmatprep.subr.mxu0 0.0
    %1136 = vmatpush1.msra.mxu0 %v1126
    %1137 = vmatprep.subr.mxu0 0.0
    %1138 = vmatpush1.msra.mxu0 0.0
    %1139 = vmatprep.subr.mxu0 0.0
    %1140 = vmatpush1.msra.mxu0 0.0
    %1141 = vmatprep.subr.mxu0 0.0
    %1142 = vmatpush1.msra.mxu0 0.0
    %1143 = vmatprep.subr.mxu0 0.0
    %1144 = vmatpush1.msra.mxu0 0.0
    %1145 = vmatprep.subr.mxu0 0.0
    %1146 = vmatpush1.msra.mxu0 0.0
    %1147 = vmatprep.subr.mxu0 0.0
    %1148 = vmatpush1.msra.mxu0 0.0
    %1149 = vmatprep.subr.mxu0 0.0
    %1150 = vmatpush1.msra.mxu0 0.0
    %1151 = vmatprep.subr.mxu0 0.0
    %1152 = vmatpush1.msra.mxu0 0.0
    %1153 = vmatprep.subr.mxu0 0.0
    %1154 = vmatpush1.msra.mxu0 0.0
    %1155 = vmatprep.subr.mxu0 0.0
    %1156 = vmatpush1.msra.mxu0 0.0
    %1157 = vmatprep.subr.mxu0 0.0
    %1158 = vmatpush1.msra.mxu0 0.0
    %1159 = vmatprep.subr.mxu0 0.0
    %1160 = vmatpush1.msra.mxu0 0.0
    %1161 = vmatprep.subr.mxu0 0.0
    %1162 = vmatpush1.msra.mxu0 0.0
    %1163 = vmatprep.subr.mxu0 0.0
    %1164 = vmatpush1.msra.mxu0 0.0
    %1165 = vmatprep.subr.mxu0 0.0
    %1166 = vmatpush1.msra.mxu0 0.0
    %1167 = vmatprep.subr.mxu0 0.0
    %1168 = vmatpush1.msra.mxu0 0.0
    %1169 = vmatprep.subr.mxu0 0.0
    %1170 = vmatpush1.msra.mxu0 0.0
    %1171 = vmatprep.subr.mxu0 0.0
    %1172 = vmatpush1.msra.mxu0 0.0
    %1173 = vmatprep.subr.mxu0 0.0
    %1174 = vmatpush1.msra.mxu0 0.0
    %1175 = vmatprep.subr.mxu0 0.0
    %1176 = vmatpush1.msra.mxu0 0.0
    %1177 = vmatprep.subr.mxu0 0.0
    %1178 = vmatpush1.msra.mxu0 0.0
    %1179 = vmatprep.subr.mxu0 0.0
    %1180 = vmatpush1.msra.mxu0 0.0
    %1181 = vmatprep.subr.mxu0 0.0
    %1182 = vmatpush1.msra.mxu0 0.0
    %1183 = vmatprep.subr.mxu0 0.0
    %1184 = vmatpush1.msra.mxu0 0.0
    %1185 = vmatprep.subr.mxu0 0.0
    %1186 = vmatpush1.msra.mxu0 0.0
    %1187 = vmatprep.subr.mxu0 0.0
    %1188 = vmatpush1.msra.mxu0 0.0
    %1189 = vmatprep.subr.mxu0 0.0
    %1190 = vmatpush1.msra.mxu0 0.0
    %1191 = vmatprep.subr.mxu0 0.0
    %1192 = vmatpush1.msra.mxu0 0.0
    %1193 = vmatprep.subr.mxu0 0.0
    %1194 = vmatpush1.msra.mxu0 0.0
    %1195 = vmatprep.subr.mxu0 0.0
    %1196 = vmatpush1.msra.mxu0 0.0
    %1197 = vmatprep.mubr.f32.mxu0 0.0
    %1198 = vmatmul.mubr.f32.gmra.mrb[0].mxu0 %v1128
    %v1199 = vpop.f32.mrb[0].mxu0
    %v1200 = vadd.f32 0.0, %v1199
    %v1201 = vpop.f32.mrb[0].mxu0
    %1202 = vmatprep.mubr.f32.mxu0 0.0
    %1203 = vmatmul.mubr.f32.gmra.mrb[0].mxu0 %v1131
    %v1204 = vpop.f32.mrb[0].mxu0
    %v1205 = vadd.f32 0.0, %v1204
    %v1206 = vpop.f32.mrb[0].mxu0
    %1207 = vdwg.mxu0
    %v1208 = vlaneseq
    %v1209 = vshrl.u32 %v1208, 7
    %v1210 = vsub.s32 0, %v1209
    %v1211 = vrot.slane %v44, %v1210
    %v1213 = vsel %vm45, %v1200, 0
    %v1216 = vsel %vm45, %v1205, 0
    %1218 = vmatprep.subr.mxu0 0.0
    %1219 = vmatpush1.msra.mxu0 %v39
    %1220 = vmatprep.subr.mxu0 0.0
    %1221 = vmatpush1.msra.mxu0 0.0
    %1222 = vmatprep.subr.mxu0 0.0
    %1223 = vmatpush1.msra.mxu0 0.0
    %1224 = vmatprep.subr.mxu0 0.0
    %1225 = vmatpush1.msra.mxu0 0.0
    %1226 = vmatprep.subr.mxu0 0.0
    %1227 = vmatpush1.msra.mxu0 0.0
    %1228 = vmatprep.subr.mxu0 0.0
    %1229 = vmatpush1.msra.mxu0 0.0
    %1230 = vmatprep.subr.mxu0 0.0
    %1231 = vmatpush1.msra.mxu0 0.0
    %1232 = vmatprep.subr.mxu0 0.0
    %1233 = vmatpush1.msra.mxu0 0.0
    %1234 = vmatprep.subr.mxu0 0.0
    %1235 = vmatpush1.msra.mxu0 0.0
    %1236 = vmatprep.subr.mxu0 0.0
    %1237 = vmatpush1.msra.mxu0 0.0
    %1238 = vmatprep.subr.mxu0 0.0
    %1239 = vmatpush1.msra.mxu0 0.0
    %1240 = vmatprep.subr.mxu0 0.0
    %1241 = vmatpush1.msra.mxu0 0.0
    %1242 = vmatprep.subr.mxu0 0.0
    %1243 = vmatpush1.msra.mxu0 0.0
    %1244 = vmatprep.subr.mxu0 0.0
    %1245 = vmatpush1.msra.mxu0 0.0
    %1246 = vmatprep.subr.mxu0 0.0
    %1247 = vmatpush1.msra.mxu0 0.0
    %1248 = vmatprep.subr.mxu0 0.0
    %1249 = vmatpush1.msra.mxu0 0.0
    %1250 = vmatprep.subr.mxu0 0.0
    %1251 = vmatpush1.msra.mxu0 0.0
    %1252 = vmatprep.subr.mxu0 0.0
    %1253 = vmatpush1.msra.mxu0 0.0
    %1254 = vmatprep.subr.mxu0 0.0
    %1255 = vmatpush1.msra.mxu0 0.0
    %1256 = vmatprep.subr.mxu0 0.0
    %1257 = vmatpush1.msra.mxu0 0.0
    %1258 = vmatprep.subr.mxu0 0.0
    %1259 = vmatpush1.msra.mxu0 0.0
    %1260 = vmatprep.subr.mxu0 0.0
    %1261 = vmatpush1.msra.mxu0 0.0
    %1262 = vmatprep.subr.mxu0 0.0
    %1263 = vmatpush1.msra.mxu0 0.0
    %1264 = vmatprep.subr.mxu0 0.0
    %1265 = vmatpush1.msra.mxu0 0.0
    %1266 = vmatprep.subr.mxu0 0.0
    %1267 = vmatpush1.msra.mxu0 0.0
    %1268 = vmatprep.subr.mxu0 0.0
    %1269 = vmatpush1.msra.mxu0 0.0
    %1270 = vmatprep.subr.mxu0 0.0
    %1271 = vmatpush1.msra.mxu0 0.0
    %1272 = vmatprep.subr.mxu0 0.0
    %1273 = vmatpush1.msra.mxu0 0.0
    %1274 = vmatprep.subr.mxu0 0.0
    %1275 = vmatpush1.msra.mxu0 0.0
    %1276 = vmatprep.subr.mxu0 0.0
    %1277 = vmatpush1.msra.mxu0 0.0
    %1278 = vmatprep.subr.mxu0 0.0
    %1279 = vmatpush1.msra.mxu0 0.0
    %1280 = vmatprep.subr.mxu0 0.0
    %1281 = vmatpush1.msra.mxu0 0.0
    %1282 = vmatprep.mubr.f32.mxu0 0.0
    %1283 = vmatmul.mubr.f32.gmra.mrb[0].mxu0 %v1213
    %v1284 = vpop.f32.mrb[0].mxu0
    %v1285 = vadd.f32 %v1211, %v1284
    %v1286 = vpop.f32.mrb[0].mxu0
    %1287 = vmatprep.mubr.f32.mxu0 0.0
    %1288 = vmatmul.mubr.f32.gmra.mrb[0].mxu0 %v1216
    %v1289 = vpop.f32.mrb[0].mxu0
    %v1290 = vadd.f32 %v1211, %v1289
    %v1291 = vpop.f32.mrb[0].mxu0
    %1292 = vdwg.mxu0
    %1293 = vmax.xlane.f32.xlu0 %v1285
    %v1294 = vpop.xlane.xlu0 %1293
    %1295 = vmax.xlane.f32.xlu0 %v1290
    %v1296 = vpop.xlane.xlu0 %1295
    %v1297 = vsub.f32 %v1285, %v1294
    %v1298 = vsub.f32 %v1290, %v1296
    %v1299 = vmul.f32 %v1297, 1.442695
    %v1300 = vpow.pop %v1299
    %v1301 = vmul.f32 %v1298, 1.442695
    %v1302 = vpow.pop %v1301
    %1303 = vadd.xlane.f32.xlu0 %v1300
    %v1304 = vpop.xlane.xlu0 %1303
    %1305 = vadd.xlane.f32.xlu0 %v1302
    %v1306 = vpop.xlane.xlu0 %1305
    %v1307 = vlog2.pop %v1304
    %v1308 = vmul.f32 %v1307, 0.6931472
    %v1309 = vlog2.pop %v1306
    %v1310 = vmul.f32 %v1309, 0.6931472
    %v1311 = vsub.f32 %v1297, %v1308
    %v1312 = vsub.f32 %v1298, %v1310
    %1313 = vst [vmem:[#allocation5] sm:$0xff] %v1311
    %1314 = vst [vmem:[#allocation5 + $0x8] sm:$0xff] %v1312
    // Predicated region
    $region10: #{tpu_custom_call.1} parent=1 // pred_check
      _
    $region11: #{tpu_custom_call.1} parent=1 // pred_check_branch
      %1316 = sbr.rel (0) target = $region13
    $region12: #{tpu_custom_call.1} parent=1 // pred_region
      %s1318 = ssub.s32 256, 256
      %1319 = vsyncadd [#allocation4], %s1318
      %s1320 = sshll.u32 [#allocation5], 4
      %s1321 = int_to_ptr.vmem [resolvable:$true] %s1320
      %1326 = dma.vmem_to_hbm [thread:$0]  %s1321, 256, %s1, [#allocation4], 128, 128, 8
    $region13: #{tpu_custom_call.1} parent=1 // pred_fallthru
      _
    // Predicated region
    $region14: #{tpu_custom_call.1} parent=1 // pred_check
      _
    $region15: #{tpu_custom_call.1} parent=1 // pred_check_branch
      %1328 = sbr.rel (0) target = $region17
    $region16: #{tpu_custom_call.1} parent=1 // pred_region
      %1329 = dma.done [#allocation4], 256
    $region17: #{tpu_custom_call.1} parent=1 // pred_fallthru
      _
    %1330 = vsyncpa [#allocation3], 1
    %1331 = vsyncpa [#allocation4], 1

</llo_original>
